<compile_context>
chip_gen: v5e
topology: v5e:2x2
jax: 0.10.0
libtpu: 0.0.40
codegen_flags: <defaults>
</compile_context>

<pallas_src>
import functools

import jax
import jax.numpy as jnp
import numpy as np
from jax.experimental import pallas as pl
from jax.experimental.pallas import tpu as pltpu


# ----------------------------------------------------------------------------
# Kernel 1: non-overlapping avg_pool3d (kernel_size == stride)
# ----------------------------------------------------------------------------
def _avg_pool_kernel(x_ref, o_ref, *, st, sh, sw, C):
    # x_ref block: (1, 1, st, tHo, sh, Wo, sw*C)   (sublane = Wo, lane = sw*C)
    # o_ref block: (1, 1, tHo, Wo, C)
    acc = jnp.zeros(o_ref.shape[2:], jnp.float32)
    for dt in range(st):
        for dh in range(sh):
            for dw in range(sw):
                acc = acc + x_ref[0, 0, dt, :, dh, :, dw * C:(dw + 1) * C].astype(jnp.float32)
    o_ref[0, 0] = (acc * (1.0 / float(st * sh * sw))).astype(o_ref.dtype)


def avg_pool3d_pallas(x_cl, stride, out_dtype=None, target_block_bytes=8 << 20):
    """x_cl: (B, T, H, W, C) channels-last.  kernel_size == stride (Downsample)."""
    B, T, H, W, C = x_cl.shape
    st, sh, sw = stride
    To, Ho, Wo = T // st, H // sh, W // sw
    out_dtype = x_cl.dtype if out_dtype is None else out_dtype
    # PyTorch avg_pool3d truncates trailing elements that don't fill a window.
    x_cl = x_cl[:, :To * st, :Ho * sh, :Wo * sw, :]
    # Pure contiguous reshape kept adjacent to the NCDHW->NDHWC transpose so XLA
    # fuses them into one relayout pass; block's last two dims stay (Wo, sw*C).
    x7 = x_cl.reshape(B, To, st, Ho, sh, Wo, sw * C)

    in_row = st * sh * sw * C * Wo * x_cl.dtype.itemsize        # bytes per Ho-row of a block
    out_row = Wo * C * jnp.dtype(out_dtype).itemsize
    # ~8 MiB input blocks (pool is purely HBM-bound; big tiles reach roofline).
    tHo = int(max(1, min(Ho, target_block_bytes // max(1, in_row))))
    grid = (B, To, pl.cdiv(Ho, tHo))                            # masked last H block

    vmem_limit = int(min(100 << 20, max(32 << 20, 2 * tHo * (in_row + out_row) + (8 << 20))))

    # NOTE: output stays channels-last (C in lanes) because the conv consumes C
    # as the contraction dim; for production C >= 128 stores are already
    # lane-dense.  (Lane-packing Wo*C would force a host relayout for the conv.)
    kern = functools.partial(_avg_pool_kernel, st=st, sh=sh, sw=sw, C=C)
    return pl.pallas_call(
        kern,
        out_shape=jax.ShapeDtypeStruct((B, To, Ho, Wo, C), out_dtype),
        grid=grid,
        in_specs=[pl.BlockSpec((1, 1, st, tHo, sh, Wo, sw * C),
                               lambda b, t, h: (b, t, 0, h, 0, 0, 0))],
        out_specs=pl.BlockSpec((1, 1, tHo, Wo, C),
                               lambda b, t, h: (b, t, h, 0, 0)),
        compiler_params=pltpu.CompilerParams(
            dimension_semantics=("parallel", "parallel", "parallel"),
            vmem_limit_bytes=vmem_limit),
    )(x7)


# ----------------------------------------------------------------------------
# Kernel 2: causal 3x3x3 conv (stride 1), taps formed in-kernel, no host pad
# ----------------------------------------------------------------------------
def _causal_conv3d_kernel(x_ref, w_ref, b_ref, o_ref, pad_ref, acc_ref, *,
                          Ho, Wo, kh, kw, tp, compute_dtype):
    # x_ref  : (1, 1, Ho, Wo, C)     pooled frame for time-tap k (clamped index map)
    # w_ref  : (kt*kh, kw*C, Cout)   all weights, VMEM-resident (constant index map)
    # b_ref  : (1, Cout)             f32 bias
    # o_ref  : (1, 1, Ho, Wo, Cout)  resident across the time-tap ("arbitrary") axis
    # pad_ref: (Ho+2hp, Wo+2wp, C)   in-VMEM zero-padded frame scratch (compute dtype)
    # acc_ref: (Ho*Wo, Cout)         f32 accumulator scratch
    t = pl.program_id(1)
    k = pl.program_id(2)
    hp, wp = kh // 2, kw // 2
    Cout = o_ref.shape[-1]

    @pl.when(k == 0)
    def _init():
        acc_ref[...] = jnp.zeros_like(acc_ref)
        pad_ref[...] = jnp.zeros_like(pad_ref)   # borders stay zero afterwards

    # Causal time padding: tap k reads pooled frame (t + k - tp); skip when that
    # frame lies in the zero padding (t + k < tp).
    @pl.when(t + k >= tp)
    def _accumulate():
        # Copy this tap's frame into the interior of the padded scratch (cast
        # to the bf16 MXU operand dtype during the copy).
        pad_ref[hp:hp + Ho, wp:wp + Wo, :] = x_ref[0, 0].astype(compute_dtype)
        contrib = None
        for dh in range(kh):
            # Fold kw into the contraction: LHS (Ho*Wo, kw*C), K = kw*C.
            lhs = jnp.concatenate(
                [pad_ref[dh:dh + Ho, dw:dw + Wo, :] for dw in range(kw)], axis=-1)
            d = jnp.dot(lhs.reshape(Ho * Wo, -1), w_ref[k * kh + dh],
                        preferred_element_type=jnp.float32)
            contrib = d if contrib is None else contrib + d
        # Single accumulator read-modify-write per grid step.
        acc_ref[...] = acc_ref[...] + contrib

    @pl.when(k == pl.num_programs(2) - 1)
    def _finalize():
        res = acc_ref[...] + b_ref[...].astype(jnp.float32)
        o_ref[0, 0] = res.reshape(Ho, Wo, Cout).astype(o_ref.dtype)


def causal_conv3d_pallas(p, w_folded, bias, kernel_size=(3, 3, 3),
                         out_dtype=None, compute_dtype=jnp.bfloat16):
    """CausalConv3d(chan, chan, kernel_size=3, stride=1), pad_mode='constant'.

    p:        (B, To, Ho, Wo, C) channels-last pooled activations (ideally bf16)
    w_folded: (kt*kh, kw*C, Cout) weights, pre-folded & pre-cast on the host
    bias:     (Cout,)
    """
    B, To, Ho, Wo, C = p.shape
    kt, kh, kw = kernel_size
    Cout = w_folded.shape[-1]
    assert w_folded.shape == (kt * kh, kw * C, Cout), w_folded.shape
    out_dtype = p.dtype if out_dtype is None else out_dtype
    tp, hp, wp = kt - 1, kh // 2, kw // 2
    Hp, Wp = Ho + 2 * hp, Wo + 2 * wp

    b2 = bias.reshape(1, Cout).astype(jnp.float32)

    cd_size = jnp.dtype(compute_dtype).itemsize
    act_block = Ho * Wo * C * p.dtype.itemsize
    out_block = Ho * Wo * Cout * jnp.dtype(out_dtype).itemsize
    need = (2 * act_block + 2 * out_block + Hp * Wp * C * cd_size
            + Ho * Wo * Cout * 4 + kt * kh * kw * C * Cout * cd_size
            + 2 * Ho * Wo * kw * C * cd_size)
    vmem_limit = int(min(100 << 20, max(48 << 20, 2 * need)))

    flops = 2 * B * To * Ho * Wo * C * Cout * kt * kh * kw
    bytes_accessed = int(
        kt * B * To * Ho * Wo * C * p.dtype.itemsize     # TODO(synk): rolling buffer -> ~1x
        + kt * kh * kw * C * Cout * cd_size + Cout * 4
        + B * To * Ho * Wo * Cout * jnp.dtype(out_dtype).itemsize)

    # TODO(synk): for production-sized frames on v7x, tile the output H axis with
    # halo'd manual DMA; full (padded) frame planes are used here.
    kern = functools.partial(_causal_conv3d_kernel, Ho=Ho, Wo=Wo, kh=kh, kw=kw,
                             tp=tp, compute_dtype=compute_dtype)
    return pl.pallas_call(
        kern,
        out_shape=jax.ShapeDtypeStruct((B, To, Ho, Wo, Cout), out_dtype),
        grid=(B, To, kt),
        in_specs=[
            # Clamped time index: tap k of output frame t reads frame t+k-tp
            # (clamped to 0; the kernel skips the accumulation when invalid).
            pl.BlockSpec((1, 1, Ho, Wo, C),
                         lambda b, t, k: (b, jnp.maximum(t + k - tp, 0), 0, 0, 0)),
            # Full weight tensor, constant index map -> fetched once, VMEM-resident.
            pl.BlockSpec((kt * kh, kw * C, Cout), lambda b, t, k: (0, 0, 0)),
            pl.BlockSpec((1, Cout), lambda b, t, k: (0, 0)),
        ],
        out_specs=pl.BlockSpec((1, 1, Ho, Wo, Cout), lambda b, t, k: (b, t, 0, 0, 0)),
        scratch_shapes=[pltpu.VMEM((Hp, Wp, C), compute_dtype),
                        pltpu.VMEM((Ho * Wo, Cout), jnp.float32)],
        compiler_params=pltpu.CompilerParams(
            dimension_semantics=("parallel", "parallel", "arbitrary"),
            vmem_limit_bytes=vmem_limit),
        cost_estimate=pl.CostEstimate(flops=flops, transcendentals=0,
                                      bytes_accessed=bytes_accessed),
    )(p, w_folded, b2)


# ----------------------------------------------------------------------------
# Downsample module (JAX/Pallas)
# ----------------------------------------------------------------------------
class Downsample:
    def __init__(self, in_channels, with_conv, stride=(2, 2, 2), key=None,
                 compute_dtype=jnp.bfloat16):
        self.with_conv = with_conv
        self.stride = stride
        self.in_channels = in_channels
        self.compute_dtype = compute_dtype
        if self.with_conv:
            # Deterministic synthetic init (PyTorch Conv3d default: U(+-1/sqrt(fan_in)))
            key = jax.random.PRNGKey(0) if key is None else key
            kw_key, kb_key = jax.random.split(key)
            fan_in = in_channels * 3 * 3 * 3
            bound = 1.0 / float(np.sqrt(fan_in))
            self.weight = jax.random.uniform(
                kw_key, (in_channels, in_channels, 3, 3, 3), jnp.float32, -bound, bound)
            self.bias = jax.random.uniform(
                kb_key, (in_channels,), jnp.float32, -bound, bound)
            # (Cout, Cin, kt, kh, kw) -> (kt, kh, kw, Cin, Cout) -> (kt*kh, kw*Cin, Cout),
            # pre-cast to the MXU operand dtype once on the host.
            wt = jnp.transpose(self.weight, (2, 3, 4, 1, 0))
            self.w_folded = wt.reshape(3 * 3, 3 * in_channels, in_channels).astype(compute_dtype)

    def __call__(self, x):
        # x: [B, C, T, H, W]  (PyTorch NCDHW)
        assert x.ndim == 5, "x.shape should be [b, c, t, h, w]"
        x_cl = jnp.transpose(x, (0, 2, 3, 4, 1))  # -> (B, T, H, W, C)
        if x.shape[2] == 1:
            stride = (1, self.stride[1], self.stride[2])
        else:
            stride = self.stride
        # Pool emits bf16 directly when it feeds the conv (halves the pooled
        # intermediate's HBM bytes); pool-only path keeps the input dtype.
        pool_dtype = self.compute_dtype if self.with_conv else x.dtype
        p = avg_pool3d_pallas(x_cl, stride, out_dtype=pool_dtype)
        if self.with_conv:
            p = causal_conv3d_pallas(p, self.w_folded, self.bias, kernel_size=(3, 3, 3),
                                     out_dtype=x.dtype, compute_dtype=self.compute_dtype)
        return jnp.transpose(p, (0, 4, 1, 2, 3))  # -> (B, C, T', H', W')


# ----------------------------------------------------------------------------
# Pure-JAX reference for correctness checking (mirrors the kernel's precision:
# f32 pooling, bf16 conv operands, f32 accumulation)
# ----------------------------------------------------------------------------
def _reference(x, module):
    B, C, T, H, W = x.shape
    if T == 1:
        st, sh, sw = 1, module.stride[1], module.stride[2]
    else:
        st, sh, sw = module.stride
    To, Ho, Wo = T // st, H // sh, W // sw
    xc = x[:, :, :To * st, :Ho * sh, :Wo * sw]
    pooled = xc.reshape(B, C, To, st, Ho, sh, Wo, sw).mean(axis=(3, 5, 7))
    if not module.with_conv:
        return pooled
    lhs = pooled.astype(module.compute_dtype)
    rhs = module.weight.astype(module.compute_dtype)
    out = jax.lax.conv_general_dilated(
        lhs, rhs,
        window_strides=(1, 1, 1),
        padding=[(2, 0), (1, 1), (1, 1)],
        dimension_numbers=("NCDHW", "OIDHW", "NCDHW"),
        preferred_element_type=jnp.float32)
    out = out + module.bias[None, :, None, None, None]
    return out.astype(x.dtype)


if __name__ == "__main__":
    key = jax.random.PRNGKey(0)
    k_x, k_p, k_x1 = jax.random.split(key, 3)
    B, C, T, H, W = 2, 4, 8, 16, 16
    x = jax.random.normal(k_x, (B, C, T, H, W), jnp.float32)

    model = Downsample(in_channels=C, with_conv=True, stride=(2, 2, 2), key=k_p)
    fwd = jax.jit(model.__call__)

    y = jax.block_until_ready(fwd(x))
    assert y.shape == (B, C, T // 2, H // 2, W // 2), y.shape
    np.testing.assert_allclose(np.asarray(y), np.asarray(_reference(x, model)),
                               rtol=2e-3, atol=2e-3)

    # Single-frame path (pool stride becomes (1, 2, 2)); exercises the causal time mask.
    x1 = jax.random.normal(k_x1, (B, C, 1, H, W), jnp.float32)
    y1 = jax.block_until_ready(fwd(x1))
    assert y1.shape == (B, C, 1, H // 2, W // 2), y1.shape
    np.testing.assert_allclose(np.asarray(y1), np.asarray(_reference(x1, model)),
                               rtol=2e-3, atol=2e-3)

    # Pool-only path stays in the input dtype and precision.
    model_nc = Downsample(in_channels=C, with_conv=False, stride=(2, 2, 2))
    y2 = jax.block_until_ready(jax.jit(model_nc.__call__)(x))
    assert y2.shape == (B, C, T // 2, H // 2, W // 2), y2.shape
    np.testing.assert_allclose(np.asarray(y2), np.asarray(_reference(x, model_nc)),
                               rtol=1e-5, atol=1e-6)

    print("KERNEL_OK")
</pallas_src>

<mosaic_0001>
module attributes {stable_mosaic.version = 11 : i64} {
  func.func @_causal_conv3d_kernel(%arg0: i32, %arg1: i32, %arg2: i32, %arg3: memref<1x1x8x8x4xbf16, #tpu.memory_space<vmem>>, %arg4: memref<9x12x4xbf16, #tpu.memory_space<vmem>>, %arg5: memref<1x4xf32, #tpu.memory_space<vmem>>, %arg6: memref<1x1x8x8x4xf32, #tpu.memory_space<vmem>>, %arg7: memref<10x10x4xbf16, #tpu.memory_space<vmem>>, %arg8: memref<64x4xf32, #tpu.memory_space<vmem>>) attributes {dimension_semantics = [#tpu.dimension_semantics<parallel>, #tpu.dimension_semantics<parallel>, #tpu.dimension_semantics<arbitrary>], iteration_bounds = array<i64: 2, 4, 3>, scalar_prefetch = 0 : i64, scratch_operands = 2 : i64, tpu.core_type = #tpu.core_type<tc>, window_params = [{transform_indices = @transform_0, window_bounds = array<i64: 1, 1, 8, 8, 4>}, {pipeline_mode = #tpu.pipeline_mode<synchronous>, transform_indices = @transform_1, window_bounds = array<i64: 9, 12, 4>}, {pipeline_mode = #tpu.pipeline_mode<synchronous>, transform_indices = @transform_2, window_bounds = array<i64: 1, 4>}, {transform_indices = @transform_3, window_bounds = array<i64: 1, 1, 8, 8, 4>}]} {
    %c0_i32 = arith.constant 0 : i32
    %0 = arith.cmpi eq, %arg2, %c0_i32 : i32
    %1 = arith.extui %0 : i1 to i32
    %c0_i32_0 = arith.constant 0 : i32
    %2 = arith.cmpi ne, %1, %c0_i32_0 : i32
    scf.if %2 {
      %cst = arith.constant 0.000000e+00 : f32
      %10 = vector.broadcast %cst : f32 to vector<64x4xf32>
      %c0 = arith.constant 0 : index
      %c0_4 = arith.constant 0 : index
      %11 = vector.load %arg8[%c0, %c0_4] : memref<64x4xf32, #tpu.memory_space<vmem>>, vector<64x4xf32>
      tpu.vector_store %arg8[%c0, %c0_4], %10 {strides = array<i32>} : memref<64x4xf32, #tpu.memory_space<vmem>>, vector<64x4xf32>,
      %cst_5 = arith.constant 0.000000e+00 : bf16
      %12 = vector.broadcast %cst_5 : bf16 to vector<10x10x4xbf16>
      %c0_6 = arith.constant 0 : index
      %c0_7 = arith.constant 0 : index
      %c0_8 = arith.constant 0 : index
      %13 = vector.load %arg7[%c0_6, %c0_7, %c0_8] : memref<10x10x4xbf16, #tpu.memory_space<vmem>>, vector<10x10x4xbf16>
      tpu.vector_store %arg7[%c0_6, %c0_7, %c0_8], %12 {strides = array<i32>} : memref<10x10x4xbf16, #tpu.memory_space<vmem>>, vector<10x10x4xbf16>,
    } else {
    }
    %3 = arith.addi %arg1, %arg2 : i32
    %c2_i32 = arith.constant 2 : i32
    %4 = arith.cmpi sge, %3, %c2_i32 : i32
    %5 = arith.extui %4 : i1 to i32
    %c0_i32_1 = arith.constant 0 : i32
    %6 = arith.cmpi ne, %5, %c0_i32_1 : i32
    scf.if %6 {
      %c0 = arith.constant 0 : index
      %c0_4 = arith.constant 0 : index
      %c0_5 = arith.constant 0 : index
      %c0_6 = arith.constant 0 : index
      %c0_7 = arith.constant 0 : index
      %10 = vector.load %arg3[%c0, %c0_4, %c0_5, %c0_6, %c0_7] : memref<1x1x8x8x4xbf16, #tpu.memory_space<vmem>>, vector<1x1x8x8x4xbf16>
      %11 = vector.shape_cast %10 : vector<1x1x8x8x4xbf16> to vector<8x8x4xbf16>
      %c1 = arith.constant 1 : index
      %c1_8 = arith.constant 1 : index
      %c0_9 = arith.constant 0 : index
      %12 = vector.load %arg7[%c1, %c1_8, %c0_9] : memref<10x10x4xbf16, #tpu.memory_space<vmem>>, vector<8x8x4xbf16>
      tpu.vector_store %arg7[%c1, %c1_8, %c0_9], %11 {strides = array<i32>} : memref<10x10x4xbf16, #tpu.memory_space<vmem>>, vector<8x8x4xbf16>,
      %c0_10 = arith.constant 0 : index
      %c0_11 = arith.constant 0 : index
      %c0_12 = arith.constant 0 : index
      %13 = vector.load %arg7[%c0_10, %c0_11, %c0_12] : memref<10x10x4xbf16, #tpu.memory_space<vmem>>, vector<8x8x4xbf16>
      %c0_13 = arith.constant 0 : index
      %c1_14 = arith.constant 1 : index
      %c0_15 = arith.constant 0 : index
      %14 = vector.load %arg7[%c0_13, %c1_14, %c0_15] : memref<10x10x4xbf16, #tpu.memory_space<vmem>>, vector<8x8x4xbf16>
      %c0_16 = arith.constant 0 : index
      %c2 = arith.constant 2 : index
      %c0_17 = arith.constant 0 : index
      %15 = vector.load %arg7[%c0_16, %c2, %c0_17] : memref<10x10x4xbf16, #tpu.memory_space<vmem>>, vector<8x8x4xbf16>
      %16 = tpu.concatenate %13, %14, %15 in 2 : vector<8x8x4xbf16>, vector<8x8x4xbf16>, vector<8x8x4xbf16> -> vector<8x8x12xbf16>
      %17 = vector.shape_cast %16 : vector<8x8x12xbf16> to vector<64x12xbf16>
      %c3_i32 = arith.constant 3 : i32
      %18 = arith.muli %arg2, %c3_i32 : i32
      %c0_i32_18 = arith.constant 0 : i32
      %19 = arith.addi %18, %c0_i32_18 : i32
      %20 = arith.index_cast %19 : i32 to index
      %c0_19 = arith.constant 0 : index
      %c0_20 = arith.constant 0 : index
      %21 = vector.load %arg4[%20, %c0_19, %c0_20] : memref<9x12x4xbf16, #tpu.memory_space<vmem>>, vector<1x12x4xbf16>
      %22 = vector.shape_cast %21 : vector<1x12x4xbf16> to vector<12x4xbf16>
      %cst = arith.constant dense<0.000000e+00> : vector<64x4xf32>
      %23 = tpu.matmul %17, %22, %cst {dimension_numbers = #tpu.dot_dimension_numbers<[1], [0], [0], [1], [0, 0, 1, 1], [], []>} : vector<64x12xbf16>, vector<12x4xbf16>, vector<64x4xf32> -> vector<64x4xf32>
      %c1_21 = arith.constant 1 : index
      %c0_22 = arith.constant 0 : index
      %c0_23 = arith.constant 0 : index
      %24 = vector.load %arg7[%c1_21, %c0_22, %c0_23] : memref<10x10x4xbf16, #tpu.memory_space<vmem>>, vector<8x8x4xbf16>
      %c1_24 = arith.constant 1 : index
      %c1_25 = arith.constant 1 : index
      %c0_26 = arith.constant 0 : index
      %25 = vector.load %arg7[%c1_24, %c1_25, %c0_26] : memref<10x10x4xbf16, #tpu.memory_space<vmem>>, vector<8x8x4xbf16>
      %c1_27 = arith.constant 1 : index
      %c2_28 = arith.constant 2 : index
      %c0_29 = arith.constant 0 : index
      %26 = vector.load %arg7[%c1_27, %c2_28, %c0_29] : memref<10x10x4xbf16, #tpu.memory_space<vmem>>, vector<8x8x4xbf16>
      %27 = tpu.concatenate %24, %25, %26 in 2 : vector<8x8x4xbf16>, vector<8x8x4xbf16>, vector<8x8x4xbf16> -> vector<8x8x12xbf16>
      %28 = vector.shape_cast %27 : vector<8x8x12xbf16> to vector<64x12xbf16>
      %c3_i32_30 = arith.constant 3 : i32
      %29 = arith.muli %arg2, %c3_i32_30 : i32
      %c1_i32 = arith.constant 1 : i32
      %30 = arith.addi %29, %c1_i32 : i32
      %31 = arith.index_cast %30 : i32 to index
      %c0_31 = arith.constant 0 : index
      %c0_32 = arith.constant 0 : index
      %32 = vector.load %arg4[%31, %c0_31, %c0_32] : memref<9x12x4xbf16, #tpu.memory_space<vmem>>, vector<1x12x4xbf16>
      %33 = vector.shape_cast %32 : vector<1x12x4xbf16> to vector<12x4xbf16>
      %cst_33 = arith.constant dense<0.000000e+00> : vector<64x4xf32>
      %34 = tpu.matmul %28, %33, %cst_33 {dimension_numbers = #tpu.dot_dimension_numbers<[1], [0], [0], [1], [0, 0, 1, 1], [], []>} : vector<64x12xbf16>, vector<12x4xbf16>, vector<64x4xf32> -> vector<64x4xf32>
      %35 = arith.addf %23, %34 : vector<64x4xf32>
      %c2_34 = arith.constant 2 : index
      %c0_35 = arith.constant 0 : index
      %c0_36 = arith.constant 0 : index
      %36 = vector.load %arg7[%c2_34, %c0_35, %c0_36] : memref<10x10x4xbf16, #tpu.memory_space<vmem>>, vector<8x8x4xbf16>
      %c2_37 = arith.constant 2 : index
      %c1_38 = arith.constant 1 : index
      %c0_39 = arith.constant 0 : index
      %37 = vector.load %arg7[%c2_37, %c1_38, %c0_39] : memref<10x10x4xbf16, #tpu.memory_space<vmem>>, vector<8x8x4xbf16>
      %c2_40 = arith.constant 2 : index
      %c2_41 = arith.constant 2 : index
      %c0_42 = arith.constant 0 : index
      %38 = vector.load %arg7[%c2_40, %c2_41, %c0_42] : memref<10x10x4xbf16, #tpu.memory_space<vmem>>, vector<8x8x4xbf16>
      %39 = tpu.concatenate %36, %37, %38 in 2 : vector<8x8x4xbf16>, vector<8x8x4xbf16>, vector<8x8x4xbf16> -> vector<8x8x12xbf16>
      %40 = vector.shape_cast %39 : vector<8x8x12xbf16> to vector<64x12xbf16>
      %c3_i32_43 = arith.constant 3 : i32
      %41 = arith.muli %arg2, %c3_i32_43 : i32
      %c2_i32_44 = arith.constant 2 : i32
      %42 = arith.addi %41, %c2_i32_44 : i32
      %43 = arith.index_cast %42 : i32 to index
      %c0_45 = arith.constant 0 : index
      %c0_46 = arith.constant 0 : index
      %44 = vector.load %arg4[%43, %c0_45, %c0_46] : memref<9x12x4xbf16, #tpu.memory_space<vmem>>, vector<1x12x4xbf16>
      %45 = vector.shape_cast %44 : vector<1x12x4xbf16> to vector<12x4xbf16>
      %cst_47 = arith.constant dense<0.000000e+00> : vector<64x4xf32>
      %46 = tpu.matmul %40, %45, %cst_47 {dimension_numbers = #tpu.dot_dimension_numbers<[1], [0], [0], [1], [0, 0, 1, 1], [], []>} : vector<64x12xbf16>, vector<12x4xbf16>, vector<64x4xf32> -> vector<64x4xf32>
      %47 = arith.addf %35, %46 : vector<64x4xf32>
      %c0_48 = arith.constant 0 : index
      %c0_49 = arith.constant 0 : index
      %48 = vector.load %arg8[%c0_48, %c0_49] : memref<64x4xf32, #tpu.memory_space<vmem>>, vector<64x4xf32>
      %49 = arith.addf %48, %47 : vector<64x4xf32>
      %c0_50 = arith.constant 0 : index
      %c0_51 = arith.constant 0 : index
      %50 = vector.load %arg8[%c0_50, %c0_51] : memref<64x4xf32, #tpu.memory_space<vmem>>, vector<64x4xf32>
      tpu.vector_store %arg8[%c0_50, %c0_51], %49 {strides = array<i32>} : memref<64x4xf32, #tpu.memory_space<vmem>>, vector<64x4xf32>,
    } else {
    }
    %c2_i32_2 = arith.constant 2 : i32
    %7 = arith.cmpi eq, %arg2, %c2_i32_2 : i32
    %8 = arith.extui %7 : i1 to i32
    %c0_i32_3 = arith.constant 0 : i32
    %9 = arith.cmpi ne, %8, %c0_i32_3 : i32
    scf.if %9 {
      %c0 = arith.constant 0 : index
      %c0_4 = arith.constant 0 : index
      %10 = vector.load %arg8[%c0, %c0_4] : memref<64x4xf32, #tpu.memory_space<vmem>>, vector<64x4xf32>
      %c0_5 = arith.constant 0 : index
      %c0_6 = arith.constant 0 : index
      %11 = vector.load %arg5[%c0_5, %c0_6] : memref<1x4xf32, #tpu.memory_space<vmem>>, vector<1x4xf32>
      %12 = vector.broadcast %11 : vector<1x4xf32> to vector<64x4xf32>
      %13 = arith.addf %10, %12 : vector<64x4xf32>
      %14 = vector.shape_cast %13 : vector<64x4xf32> to vector<8x8x4xf32>
      %c0_7 = arith.constant 0 : index
      %c0_8 = arith.constant 0 : index
      %c0_9 = arith.constant 0 : index
      %c0_10 = arith.constant 0 : index
      %c0_11 = arith.constant 0 : index
      %15 = vector.load %arg6[%c0_7, %c0_8, %c0_9, %c0_10, %c0_11] : memref<1x1x8x8x4xf32, #tpu.memory_space<vmem>>, vector<1x1x8x8x4xf32>
      %16 = vector.shape_cast %15 : vector<1x1x8x8x4xf32> to vector<8x8x4xf32>
      %17 = vector.shape_cast %14 : vector<8x8x4xf32> to vector<1x1x8x8x4xf32>
      tpu.vector_store %arg6[%c0_7, %c0_8, %c0_9, %c0_10, %c0_11], %17 {strides = array<i32>} : memref<1x1x8x8x4xf32, #tpu.memory_space<vmem>>, vector<1x1x8x8x4xf32>,
    } else {
    }
    return
  }
  func.func @transform_0(%arg0: i32, %arg1: i32, %arg2: i32) -> (i32, i32, i32, i32, i32) {
    %0 = arith.addi %arg1, %arg2 : i32
    %c2_i32 = arith.constant 2 : i32
    %1 = arith.subi %0, %c2_i32 : i32
    %c0_i32 = arith.constant 0 : i32
    %2 = arith.maxsi %1, %c0_i32 : i32
    %c0_i32_0 = arith.constant 0 : i32
    %c0_i32_1 = arith.constant 0 : i32
    %c0_i32_2 = arith.constant 0 : i32
    %c0_i32_3 = arith.constant 0 : i32
    return %arg0, %2, %c0_i32_0, %c0_i32_1, %c0_i32_2 : i32, i32, i32, i32, i32
  }
  func.func @transform_1(%arg0: i32, %arg1: i32, %arg2: i32) -> (i32, i32, i32) {
    %c0_i32 = arith.constant 0 : i32
    %c0_i32_0 = arith.constant 0 : i32
    %c0_i32_1 = arith.constant 0 : i32
    %c0_i32_2 = arith.constant 0 : i32
    return %c0_i32, %c0_i32_0, %c0_i32_1 : i32, i32, i32
  }
  func.func @transform_2(%arg0: i32, %arg1: i32, %arg2: i32) -> (i32, i32) {
    %c0_i32 = arith.constant 0 : i32
    %c0_i32_0 = arith.constant 0 : i32
    %c0_i32_1 = arith.constant 0 : i32
    return %c0_i32, %c0_i32_0 : i32, i32
  }
  func.func @transform_3(%arg0: i32, %arg1: i32, %arg2: i32) -> (i32, i32, i32, i32, i32) {
    %c0_i32 = arith.constant 0 : i32
    %c0_i32_0 = arith.constant 0 : i32
    %c0_i32_1 = arith.constant 0 : i32
    %c0_i32_2 = arith.constant 0 : i32
    return %arg0, %arg1, %c0_i32, %c0_i32_0, %c0_i32_1 : i32, i32, i32, i32, i32
  }
}

module attributes {stable_mosaic.version = 11 : i64} {
  func.func @_avg_pool_kernel(%arg0: i32, %arg1: i32, %arg2: i32, %arg3: memref<1x1x2x8x2x8x8xf32, #tpu.memory_space<vmem>>, %arg4: memref<1x1x8x8x4xbf16, #tpu.memory_space<vmem>>) attributes {dimension_semantics = [#tpu.dimension_semantics<parallel>, #tpu.dimension_semantics<parallel>, #tpu.dimension_semantics<parallel>], iteration_bounds = array<i64: 2, 4, 1>, scalar_prefetch = 0 : i64, scratch_operands = 0 : i64, tpu.core_type = #tpu.core_type<tc>, window_params = [{transform_indices = @transform_0, window_bounds = array<i64: 1, 1, 2, 8, 2, 8, 8>}, {transform_indices = @transform_1, window_bounds = array<i64: 1, 1, 8, 8, 4>}]} {
    %cst = arith.constant 0.000000e+00 : f32
    %0 = vector.broadcast %cst : f32 to vector<8x8x4xf32>
    %c0 = arith.constant 0 : index
    %c0_0 = arith.constant 0 : index
    %c0_1 = arith.constant 0 : index
    %c0_2 = arith.constant 0 : index
    %c0_3 = arith.constant 0 : index
    %c0_4 = arith.constant 0 : index
    %c0_5 = arith.constant 0 : index
    %1 = vector.load %arg3[%c0, %c0_0, %c0_1, %c0_2, %c0_3, %c0_4, %c0_5] : memref<1x1x2x8x2x8x8xf32, #tpu.memory_space<vmem>>, vector<1x1x1x8x1x8x4xf32>
    %2 = vector.shape_cast %1 : vector<1x1x1x8x1x8x4xf32> to vector<8x8x4xf32>
    %3 = arith.addf %0, %2 : vector<8x8x4xf32>
    %c0_6 = arith.constant 0 : index
    %c0_7 = arith.constant 0 : index
    %c0_8 = arith.constant 0 : index
    %c0_9 = arith.constant 0 : index
    %c0_10 = arith.constant 0 : index
    %c0_11 = arith.constant 0 : index
    %c4 = arith.constant 4 : index
    %4 = vector.load %arg3[%c0_6, %c0_7, %c0_8, %c0_9, %c0_10, %c0_11, %c4] : memref<1x1x2x8x2x8x8xf32, #tpu.memory_space<vmem>>, vector<1x1x1x8x1x8x4xf32>
    %5 = vector.shape_cast %4 : vector<1x1x1x8x1x8x4xf32> to vector<8x8x4xf32>
    %6 = arith.addf %3, %5 : vector<8x8x4xf32>
    %c0_12 = arith.constant 0 : index
    %c0_13 = arith.constant 0 : index
    %c0_14 = arith.constant 0 : index
    %c0_15 = arith.constant 0 : index
    %c1 = arith.constant 1 : index
    %c0_16 = arith.constant 0 : index
    %c0_17 = arith.constant 0 : index
    %7 = vector.load %arg3[%c0_12, %c0_13, %c0_14, %c0_15, %c1, %c0_16, %c0_17] : memref<1x1x2x8x2x8x8xf32, #tpu.memory_space<vmem>>, vector<1x1x1x8x1x8x4xf32>
    %8 = vector.shape_cast %7 : vector<1x1x1x8x1x8x4xf32> to vector<8x8x4xf32>
    %9 = arith.addf %6, %8 : vector<8x8x4xf32>
    %c0_18 = arith.constant 0 : index
    %c0_19 = arith.constant 0 : index
    %c0_20 = arith.constant 0 : index
    %c0_21 = arith.constant 0 : index
    %c1_22 = arith.constant 1 : index
    %c0_23 = arith.constant 0 : index
    %c4_24 = arith.constant 4 : index
    %10 = vector.load %arg3[%c0_18, %c0_19, %c0_20, %c0_21, %c1_22, %c0_23, %c4_24] : memref<1x1x2x8x2x8x8xf32, #tpu.memory_space<vmem>>, vector<1x1x1x8x1x8x4xf32>
    %11 = vector.shape_cast %10 : vector<1x1x1x8x1x8x4xf32> to vector<8x8x4xf32>
    %12 = arith.addf %9, %11 : vector<8x8x4xf32>
    %c0_25 = arith.constant 0 : index
    %c0_26 = arith.constant 0 : index
    %c1_27 = arith.constant 1 : index
    %c0_28 = arith.constant 0 : index
    %c0_29 = arith.constant 0 : index
    %c0_30 = arith.constant 0 : index
    %c0_31 = arith.constant 0 : index
    %13 = vector.load %arg3[%c0_25, %c0_26, %c1_27, %c0_28, %c0_29, %c0_30, %c0_31] : memref<1x1x2x8x2x8x8xf32, #tpu.memory_space<vmem>>, vector<1x1x1x8x1x8x4xf32>
    %14 = vector.shape_cast %13 : vector<1x1x1x8x1x8x4xf32> to vector<8x8x4xf32>
    %15 = arith.addf %12, %14 : vector<8x8x4xf32>
    %c0_32 = arith.constant 0 : index
    %c0_33 = arith.constant 0 : index
    %c1_34 = arith.constant 1 : index
    %c0_35 = arith.constant 0 : index
    %c0_36 = arith.constant 0 : index
    %c0_37 = arith.constant 0 : index
    %c4_38 = arith.constant 4 : index
    %16 = vector.load %arg3[%c0_32, %c0_33, %c1_34, %c0_35, %c0_36, %c0_37, %c4_38] : memref<1x1x2x8x2x8x8xf32, #tpu.memory_space<vmem>>, vector<1x1x1x8x1x8x4xf32>
    %17 = vector.shape_cast %16 : vector<1x1x1x8x1x8x4xf32> to vector<8x8x4xf32>
    %18 = arith.addf %15, %17 : vector<8x8x4xf32>
    %c0_39 = arith.constant 0 : index
    %c0_40 = arith.constant 0 : index
    %c1_41 = arith.constant 1 : index
    %c0_42 = arith.constant 0 : index
    %c1_43 = arith.constant 1 : index
    %c0_44 = arith.constant 0 : index
    %c0_45 = arith.constant 0 : index
    %19 = vector.load %arg3[%c0_39, %c0_40, %c1_41, %c0_42, %c1_43, %c0_44, %c0_45] : memref<1x1x2x8x2x8x8xf32, #tpu.memory_space<vmem>>, vector<1x1x1x8x1x8x4xf32>
    %20 = vector.shape_cast %19 : vector<1x1x1x8x1x8x4xf32> to vector<8x8x4xf32>
    %21 = arith.addf %18, %20 : vector<8x8x4xf32>
    %c0_46 = arith.constant 0 : index
    %c0_47 = arith.constant 0 : index
    %c1_48 = arith.constant 1 : index
    %c0_49 = arith.constant 0 : index
    %c1_50 = arith.constant 1 : index
    %c0_51 = arith.constant 0 : index
    %c4_52 = arith.constant 4 : index
    %22 = vector.load %arg3[%c0_46, %c0_47, %c1_48, %c0_49, %c1_50, %c0_51, %c4_52] : memref<1x1x2x8x2x8x8xf32, #tpu.memory_space<vmem>>, vector<1x1x1x8x1x8x4xf32>
    %23 = vector.shape_cast %22 : vector<1x1x1x8x1x8x4xf32> to vector<8x8x4xf32>
    %24 = arith.addf %21, %23 : vector<8x8x4xf32>
    %cst_53 = arith.constant 1.250000e-01 : f32
    %25 = vector.broadcast %cst_53 : f32 to vector<8x8x4xf32>
    %26 = arith.mulf %24, %25 : vector<8x8x4xf32>
    %27 = arith.truncf %26 : vector<8x8x4xf32> to vector<8x8x4xbf16>
    %c0_54 = arith.constant 0 : index
    %c0_55 = arith.constant 0 : index
    %c0_56 = arith.constant 0 : index
    %c0_57 = arith.constant 0 : index
    %c0_58 = arith.constant 0 : index
    %28 = vector.load %arg4[%c0_54, %c0_55, %c0_56, %c0_57, %c0_58] : memref<1x1x8x8x4xbf16, #tpu.memory_space<vmem>>, vector<1x1x8x8x4xbf16>
    %29 = vector.shape_cast %28 : vector<1x1x8x8x4xbf16> to vector<8x8x4xbf16>
    %30 = vector.shape_cast %27 : vector<8x8x4xbf16> to vector<1x1x8x8x4xbf16>
    tpu.vector_store %arg4[%c0_54, %c0_55, %c0_56, %c0_57, %c0_58], %30 {strides = array<i32>} : memref<1x1x8x8x4xbf16, #tpu.memory_space<vmem>>, vector<1x1x8x8x4xbf16>,
    return
  }
  func.func @transform_0(%arg0: i32, %arg1: i32, %arg2: i32) -> (i32, i32, i32, i32, i32, i32, i32) {
    %c0_i32 = arith.constant 0 : i32
    %c0_i32_0 = arith.constant 0 : i32
    %c0_i32_1 = arith.constant 0 : i32
    %c0_i32_2 = arith.constant 0 : i32
    %c0_i32_3 = arith.constant 0 : i32
    return %arg0, %arg1, %c0_i32, %arg2, %c0_i32_0, %c0_i32_1, %c0_i32_2 : i32, i32, i32, i32, i32, i32, i32
  }
  func.func @transform_1(%arg0: i32, %arg1: i32, %arg2: i32) -> (i32, i32, i32, i32, i32) {
    %c0_i32 = arith.constant 0 : i32
    %c0_i32_0 = arith.constant 0 : i32
    %c0_i32_1 = arith.constant 0 : i32
    return %arg0, %arg1, %arg2, %c0_i32, %c0_i32_0 : i32, i32, i32, i32, i32
  }
}

</mosaic_0001>

<llo_original>
// kernel: a_call__.2
$region0: #{a_call__.2}
  #allocation0 [shape = 'u32[]', space=smem, size = 0x4, offset = 0x4, fixed_abs, tag = 'smem constant byte address 0x4 - core index']
  #allocation1 [shape = 'u32[72,128]{1,0:T(1,128)}', space=vmem, size = 0x9000, scoped, tag = 'internal scratch']
  %s0 = inlined_call_operand.vmem [shape: f32[2,4,2,8,2,8,8], index: 0, kind: input, shape index: {}]
  %s1 = inlined_call_operand.vmem [shape: bf16[2,4,8,8,4], index: 1, kind: output, shape index: {}]
  %s2 = sld [smem:[#allocation0]]
  $region37: #{a_call__.2} parent=0
    _
  %s4 = ssub.s32 1, %s2
  %s5 = scalar_select 0, %s4, %s2
  loop: start=0, step=1, limit=10
  $region2: #{a_call__.2} parent=0 // loop_pre_header
    _
  $region3: #{a_call__.2} parent=0 // loop_header
    %s7 = sphi 0, %s11
    %p8 = scmp.ge.s32.totalorder %s7, 10
    %s14 = sphi 0, %s33
    %s15 = sphi 0, %s29
    %s16 = sphi 0, %s25
    %s17 = sphi 0, %s14
    %s18 = sphi 0, %s15
    %s19 = sphi 0, %s16
    %s20 = sphi 0, %s17
    %s21 = sphi 0, %s18
    %s22 = sphi 0, %s19
    %s40 = sphi 0, %s42
    %s43 = sphi 0, %s40
    %s44 = sphi 0, %s43
    %s60 = sphi 0, %s44
    %s70 = sphi 0, %s72
    %s73 = sphi 0, %s70
    %s74 = sphi 0, %s73
    %s90 = sphi 0, %s74
  $region4: #{a_call__.2} parent=0 // loop_header_branch
    %10 = sbr.rel (%p8) target = $region8
  $region5: #{a_call__.2} parent=0 // loop_body
    %s12 = ssub.s32 %s7, 1
    %s13 = ssub.s32 %s7, 2
    %s23 = sadd.s32 1, %s16
    %p24 = scmp.ge.s32.totalorder %s23, 1
    %s25 = scalar_select %p24, 0, %s23
    %s26 = sadd.s32 1, %s15
    %s27 = scalar_select %p24, %s26, %s15
    %p28 = scmp.ge.s32.totalorder %s27, 4
    %s29 = scalar_select %p28, 0, %s27
    %s30 = sadd.s32 1, %s14
    %s31 = scalar_select %p28, %s30, %s14
    %p32 = scmp.ge.s32.totalorder %s31, 2
    %s33 = scalar_select %p32, 0, %s31
    %s34 = ssub.s32 %s14, %s33
    %s35 = ssub.s32 %s15, %s29
    %s36 = sor.u32 %s34, %s35
    %s37 = ssub.s32 %s16, %s25
    %s38 = sor.u32 %s36, %s37
    %p39 = scmp.eq.s32.totalorder %s38, 0
    %s41 = sadd.s32 %s40, 1
    %s42 = scalar_select %p39, %s40, %s41
    %p45 = pneg %p39
    %p46 = scmp.eq.s32.totalorder %s7, 7
    %p47 = por %p45, %p46
    %p48 = scmp.ne.s32.totalorder %s40, %s43
    %p49 = scmp.eq.s32.totalorder %s7, 0
    %p50 = por %p48, %p49
    %p51 = scmp.ne.s32.totalorder %s40, %s43
    %p52 = scmp.eq.s32.totalorder %s12, 7
    %p53 = por %p51, %p52
    %p54 = scmp.ne.s32.totalorder %s43, %s44
    %p55 = scmp.eq.s32.totalorder %s12, 0
    %p56 = por %p54, %p55
    %p57 = scmp.ne.s32.totalorder %s43, %s44
    %p58 = scmp.eq.s32.totalorder %s13, 7
    %p59 = por %p57, %p58
    %p61 = scmp.ne.s32.totalorder %s44, %s60
    %p62 = scmp.eq.s32.totalorder %s13, 0
    %p63 = por %p61, %p62
    %s64 = ssub.s32 %s14, %s33
    %s65 = ssub.s32 %s15, %s29
    %s66 = sor.u32 %s64, %s65
    %s67 = ssub.s32 %s16, %s25
    %s68 = sor.u32 %s66, %s67
    %p69 = scmp.eq.s32.totalorder %s68, 0
    %s71 = sadd.s32 %s70, 1
    %s72 = scalar_select %p69, %s70, %s71
    %p75 = pneg %p69
    %p76 = scmp.eq.s32.totalorder %s7, 7
    %p77 = por %p75, %p76
    %p78 = scmp.ne.s32.totalorder %s70, %s73
    %p79 = scmp.eq.s32.totalorder %s7, 0
    %p80 = por %p78, %p79
    %p81 = scmp.ne.s32.totalorder %s70, %s73
    %p82 = scmp.eq.s32.totalorder %s12, 7
    %p83 = por %p81, %p82
    %p84 = scmp.ne.s32.totalorder %s73, %s74
    %p85 = scmp.eq.s32.totalorder %s12, 0
    %p86 = por %p84, %p85
    %p87 = scmp.ne.s32.totalorder %s73, %s74
    %p88 = scmp.eq.s32.totalorder %s13, 7
    %p89 = por %p87, %p88
    %p91 = scmp.ne.s32.totalorder %s74, %s90
    %p92 = scmp.eq.s32.totalorder %s13, 0
    %p93 = por %p91, %p92
    %p94 = scmp.le.s32.totalorder 1, %s7
    %p95 = scmp.lt.s32.totalorder %s7, 9
    %p96 = pnand %p94, %p95
    %p97 = pneg %p96
    // Predicated region
    $region9: #{a_call__.2} parent=5 // pred_check
      _
    $region10: #{a_call__.2} parent=5 // pred_check_branch
      %99 = sbr.rel (%p96) target = $region12
    $region11: #{a_call__.2} parent=5 // pred_region
      %s100 = ssub.s32 %s7, 1
    $region12: #{a_call__.2} parent=5 // pred_fallthru
      _
    %p101 = scmp.lt.s32.totalorder %s7, 8
    // Predicated region
    $region13: #{a_call__.2} parent=5 // pred_check
      %p102 = pneg %p101
    $region14: #{a_call__.2} parent=5 // pred_check_branch
      %104 = sbr.rel (%p102) target = $region16
    $region15: #{a_call__.2} parent=5 // pred_region
      // Predicated region
      $region17: #{a_call__.2} parent=15 // pred_check
        %p105 = pneg %p50
      $region18: #{a_call__.2} parent=15 // pred_check_branch
        %107 = sbr.rel (%p105) target = $region20
      $region19: #{a_call__.2} parent=15 // pred_region
        %s108 = smul.u32 8, %s16
        %p109 = scmp.lt.s32.totalorder %s14, 1
        %s110 = scalar_select %p109, %s14, 1
        %p111 = scmp.lt.s32.totalorder %s15, 3
        %s112 = scalar_select %p111, %s15, 3
        %p113 = scmp.lt.s32.totalorder %s108, 7
        %s114 = scalar_select %p113, %s108, 7
        %s115 = smul.addr %s114, 2
        %s116 = smul.addr %s112, 32
        %s117 = sadd.s32 %s115, %s116
        %s118 = smul.addr %s110, 128
        %s119 = sadd.s32 %s117, %s118
        %s120 = smul.addr %s119, 8
        %s121 = scalar_lea.vmem %s0, %s120
        %s122 = smul.u32 8, %s16
      $region20: #{a_call__.2} parent=15 // pred_fallthru
        _
    $region16: #{a_call__.2} parent=5 // pred_fallthru
      _
    %p123 = scmp.le.s32.totalorder 1, %s7
    %p124 = scmp.lt.s32.totalorder %s7, 9
    %p125 = pnand %p123, %p124
    %p126 = pneg %p125
    // Predicated region
    $region21: #{a_call__.2} parent=5 // pred_check
      _
    $region22: #{a_call__.2} parent=5 // pred_check_branch
      %128 = sbr.rel (%p125) target = $region24
    $region23: #{a_call__.2} parent=5 // pred_region
      %s129 = ssub.s32 %s7, 1
      %s130 = smul.u32 8, %s19
      %p131 = scmp.lt.s32.totalorder %s17, 1
      %s132 = scalar_select %p131, %s17, 1
      %p133 = scmp.lt.s32.totalorder %s18, 3
      %s134 = scalar_select %p133, %s18, 3
      %p135 = scmp.lt.s32.totalorder %s130, 7
      %s136 = scalar_select %p135, %s130, 7
      %s137 = smul.addr %s136, 2
      %s138 = smul.addr %s134, 32
      %s139 = sadd.s32 %s137, %s138
      %s140 = smul.addr %s132, 128
      %s141 = sadd.s32 %s139, %s140
      %s142 = smul.addr %s141, 8
      %s143 = scalar_lea.vmem %s0, %s142
      %p144 = pneg %p56
      %p145 = pneg %p53
      %p146 = pneg %p86
      %p147 = pneg %p83
      %s148 = smul.u32 8, %s19
      %p149 = scmp.lt.s32.totalorder %s17, 1
      %s150 = scalar_select %p149, %s17, 1
      %p151 = scmp.lt.s32.totalorder %s18, 3
      %s152 = scalar_select %p151, %s18, 3
      %p153 = scmp.lt.s32.totalorder %s148, 7
      %s154 = scalar_select %p153, %s148, 7
      %s155 = smul.addr %s152, 8
      %s156 = sadd.s32 %s154, %s155
      %s157 = smul.addr %s150, 32
      %s158 = sadd.s32 %s156, %s157
      %s159 = smul.addr %s158, 4
      %s160 = scalar_lea.vmem %s1, %s159
      %s161 = smul.u32 8, %s19
      %p162 = scmp.lt.s32.totalorder %s17, 1
      %s163 = scalar_select %p162, %s17, 1
      %p164 = scmp.lt.s32.totalorder %s18, 3
      %s165 = scalar_select %p164, %s18, 3
      %p166 = scmp.lt.s32.totalorder %s161, 7
      %s167 = scalar_select %p166, %s161, 7
      %s168 = smul.addr %s167, 2
      %s169 = smul.addr %s165, 32
      %s170 = sadd.s32 %s168, %s169
      %s171 = smul.addr %s163, 128
      %s172 = sadd.s32 %s170, %s171
      %s173 = smul.addr %s172, 8
      %s174 = scalar_lea.vmem %s0, %s173
      %s175 = smul.u32 8, %s19
      %s176 = smul.u32 8, %s19
      %p177 = scmp.lt.s32.totalorder %s17, 1
      %s178 = scalar_select %p177, %s17, 1
      %p179 = scmp.lt.s32.totalorder %s18, 3
      %s180 = scalar_select %p179, %s18, 3
      %p181 = scmp.lt.s32.totalorder %s176, 7
      %s182 = scalar_select %p181, %s176, 7
      %s183 = smul.addr %s180, 8
      %s184 = sadd.s32 %s182, %s183
      %s185 = smul.addr %s178, 32
      %s186 = sadd.s32 %s184, %s185
      %s187 = smul.addr %s186, 4
      %s188 = scalar_lea.vmem %s1, %s187
      %s189 = smul.u32 8, %s19
      %v190 = vld [vmem:[%s174] sm:$0xff]
      %v191 = vld [vmem:[%s174 + $0x10] sm:$0xff]
      %v192 = vld [vmem:[%s174 + $0x20] sm:$0xff]
      %v193 = vld [vmem:[%s174 + $0x30] sm:$0xff]
      %v194 = vld [vmem:[%s174 + $0x40] sm:$0xff]
      %v195 = vld [vmem:[%s174 + $0x50] sm:$0xff]
      %v196 = vld [vmem:[%s174 + $0x60] sm:$0xff]
      %v197 = vld [vmem:[%s174 + $0x70] sm:$0xff]
      %v198 = vadd.f32 %v190, 0.0
      %v199 = vadd.f32 %v191, 0.0
      %v200 = vadd.f32 %v192, 0.0
      %v201 = vadd.f32 %v193, 0.0
      %v202 = vadd.f32 %v194, 0.0
      %v203 = vadd.f32 %v195, 0.0
      %v204 = vadd.f32 %v196, 0.0
      %v205 = vadd.f32 %v197, 0.0
      %214 = vrot.lane.b32.xlu0 %v190, 124
      %v215 = vpop.permute.xlu0 %214
      %216 = vrot.lane.b32.xlu0 %v191, 124
      %v217 = vpop.permute.xlu0 %216
      %218 = vrot.lane.b32.xlu0 %v192, 124
      %v219 = vpop.permute.xlu0 %218
      %220 = vrot.lane.b32.xlu0 %v193, 124
      %v221 = vpop.permute.xlu0 %220
      %222 = vrot.lane.b32.xlu0 %v194, 124
      %v223 = vpop.permute.xlu0 %222
      %224 = vrot.lane.b32.xlu0 %v195, 124
      %v225 = vpop.permute.xlu0 %224
      %226 = vrot.lane.b32.xlu0 %v196, 124
      %v227 = vpop.permute.xlu0 %226
      %228 = vrot.lane.b32.xlu0 %v197, 124
      %v229 = vpop.permute.xlu0 %228
      %v238 = vadd.f32 %v198, %v215
      %v239 = vadd.f32 %v199, %v217
      %v240 = vadd.f32 %v200, %v219
      %v241 = vadd.f32 %v201, %v221
      %v242 = vadd.f32 %v202, %v223
      %v243 = vadd.f32 %v203, %v225
      %v244 = vadd.f32 %v204, %v227
      %v245 = vadd.f32 %v205, %v229
      %s246 = scalar_lea.vmem %s174, 8
      %v247 = vld [vmem:[%s246] sm:$0xff]
      %v248 = vld [vmem:[%s246 + $0x10] sm:$0xff]
      %v249 = vld [vmem:[%s246 + $0x20] sm:$0xff]
      %v250 = vld [vmem:[%s246 + $0x30] sm:$0xff]
      %v251 = vld [vmem:[%s246 + $0x40] sm:$0xff]
      %v252 = vld [vmem:[%s246 + $0x50] sm:$0xff]
      %v253 = vld [vmem:[%s246 + $0x60] sm:$0xff]
      %v254 = vld [vmem:[%s246 + $0x70] sm:$0xff]
      %v255 = vadd.f32 %v238, %v247
      %v256 = vadd.f32 %v239, %v248
      %v257 = vadd.f32 %v240, %v249
      %v258 = vadd.f32 %v241, %v250
      %v259 = vadd.f32 %v242, %v251
      %v260 = vadd.f32 %v243, %v252
      %v261 = vadd.f32 %v244, %v253
      %v262 = vadd.f32 %v245, %v254
      %271 = vrot.lane.b32.xlu0 %v247, 124
      %v272 = vpop.permute.xlu0 %271
      %273 = vrot.lane.b32.xlu0 %v248, 124
      %v274 = vpop.permute.xlu0 %273
      %275 = vrot.lane.b32.xlu0 %v249, 124
      %v276 = vpop.permute.xlu0 %275
      %277 = vrot.lane.b32.xlu0 %v250, 124
      %v278 = vpop.permute.xlu0 %277
      %279 = vrot.lane.b32.xlu0 %v251, 124
      %v280 = vpop.permute.xlu0 %279
      %281 = vrot.lane.b32.xlu0 %v252, 124
      %v282 = vpop.permute.xlu0 %281
      %283 = vrot.lane.b32.xlu0 %v253, 124
      %v284 = vpop.permute.xlu0 %283
      %285 = vrot.lane.b32.xlu0 %v254, 124
      %v286 = vpop.permute.xlu0 %285
      %v295 = vadd.f32 %v255, %v272
      %v296 = vadd.f32 %v256, %v274
      %v297 = vadd.f32 %v257, %v276
      %v298 = vadd.f32 %v258, %v278
      %v299 = vadd.f32 %v259, %v280
      %v300 = vadd.f32 %v260, %v282
      %v301 = vadd.f32 %v261, %v284
      %v302 = vadd.f32 %v262, %v286
      %s303 = scalar_lea.vmem %s174, 128
      %v304 = vld [vmem:[%s303] sm:$0xff]
      %v305 = vld [vmem:[%s303 + $0x10] sm:$0xff]
      %v306 = vld [vmem:[%s303 + $0x20] sm:$0xff]
      %v307 = vld [vmem:[%s303 + $0x30] sm:$0xff]
      %v308 = vld [vmem:[%s303 + $0x40] sm:$0xff]
      %v309 = vld [vmem:[%s303 + $0x50] sm:$0xff]
      %v310 = vld [vmem:[%s303 + $0x60] sm:$0xff]
      %v311 = vld [vmem:[%s303 + $0x70] sm:$0xff]
      %v312 = vadd.f32 %v295, %v304
      %v313 = vadd.f32 %v296, %v305
      %v314 = vadd.f32 %v297, %v306
      %v315 = vadd.f32 %v298, %v307
      %v316 = vadd.f32 %v299, %v308
      %v317 = vadd.f32 %v300, %v309
      %v318 = vadd.f32 %v301, %v310
      %v319 = vadd.f32 %v302, %v311
      %328 = vrot.lane.b32.xlu0 %v304, 124
      %v329 = vpop.permute.xlu0 %328
      %330 = vrot.lane.b32.xlu0 %v305, 124
      %v331 = vpop.permute.xlu0 %330
      %332 = vrot.lane.b32.xlu0 %v306, 124
      %v333 = vpop.permute.xlu0 %332
      %334 = vrot.lane.b32.xlu0 %v307, 124
      %v335 = vpop.permute.xlu0 %334
      %336 = vrot.lane.b32.xlu0 %v308, 124
      %v337 = vpop.permute.xlu0 %336
      %338 = vrot.lane.b32.xlu0 %v309, 124
      %v339 = vpop.permute.xlu0 %338
      %340 = vrot.lane.b32.xlu0 %v310, 124
      %v341 = vpop.permute.xlu0 %340
      %342 = vrot.lane.b32.xlu0 %v311, 124
      %v343 = vpop.permute.xlu0 %342
      %v352 = vadd.f32 %v312, %v329
      %v353 = vadd.f32 %v313, %v331
      %v354 = vadd.f32 %v314, %v333
      %v355 = vadd.f32 %v315, %v335
      %v356 = vadd.f32 %v316, %v337
      %v357 = vadd.f32 %v317, %v339
      %v358 = vadd.f32 %v318, %v341
      %v359 = vadd.f32 %v319, %v343
      %s360 = scalar_lea.vmem %s174, 136
      %v361 = vld [vmem:[%s360] sm:$0xff]
      %v362 = vld [vmem:[%s360 + $0x10] sm:$0xff]
      %v363 = vld [vmem:[%s360 + $0x20] sm:$0xff]
      %v364 = vld [vmem:[%s360 + $0x30] sm:$0xff]
      %v365 = vld [vmem:[%s360 + $0x40] sm:$0xff]
      %v366 = vld [vmem:[%s360 + $0x50] sm:$0xff]
      %v367 = vld [vmem:[%s360 + $0x60] sm:$0xff]
      %v368 = vld [vmem:[%s360 + $0x70] sm:$0xff]
      %v369 = vadd.f32 %v352, %v361
      %v370 = vadd.f32 %v353, %v362
      %v371 = vadd.f32 %v354, %v363
      %v372 = vadd.f32 %v355, %v364
      %v373 = vadd.f32 %v356, %v365
      %v374 = vadd.f32 %v357, %v366
      %v375 = vadd.f32 %v358, %v367
      %v376 = vadd.f32 %v359, %v368
      %385 = vrot.lane.b32.xlu0 %v361, 124
      %v386 = vpop.permute.xlu0 %385
      %387 = vrot.lane.b32.xlu0 %v362, 124
      %v388 = vpop.permute.xlu0 %387
      %389 = vrot.lane.b32.xlu0 %v363, 124
      %v390 = vpop.permute.xlu0 %389
      %391 = vrot.lane.b32.xlu0 %v364, 124
      %v392 = vpop.permute.xlu0 %391
      %393 = vrot.lane.b32.xlu0 %v365, 124
      %v394 = vpop.permute.xlu0 %393
      %395 = vrot.lane.b32.xlu0 %v366, 124
      %v396 = vpop.permute.xlu0 %395
      %397 = vrot.lane.b32.xlu0 %v367, 124
      %v398 = vpop.permute.xlu0 %397
      %399 = vrot.lane.b32.xlu0 %v368, 124
      %v400 = vpop.permute.xlu0 %399
      %v409 = vadd.f32 %v369, %v386
      %v410 = vadd.f32 %v370, %v388
      %v411 = vadd.f32 %v371, %v390
      %v412 = vadd.f32 %v372, %v392
      %v413 = vadd.f32 %v373, %v394
      %v414 = vadd.f32 %v374, %v396
      %v415 = vadd.f32 %v375, %v398
      %v416 = vadd.f32 %v376, %v400
      %v417 = vmul.f32 %v409, 0.125
      %v418 = vmul.f32 %v410, 0.125
      %v419 = vmul.f32 %v411, 0.125
      %v420 = vmul.f32 %v412, 0.125
      %v421 = vmul.f32 %v413, 0.125
      %v422 = vmul.f32 %v414, 0.125
      %v423 = vmul.f32 %v415, 0.125
      %v424 = vmul.f32 %v416, 0.125
      %v425 = vpack.c.bf16 %v417, %v417
      %v426 = vpack.c.bf16 %v418, %v418
      %v427 = vpack.c.bf16 %v419, %v419
      %v428 = vpack.c.bf16 %v420, %v420
      %v429 = vpack.c.bf16 %v421, %v421
      %v430 = vpack.c.bf16 %v422, %v422
      %v431 = vpack.c.bf16 %v423, %v423
      %v432 = vpack.c.bf16 %v424, %v424
      %vm433 = vcmask 27648
      %434 = vst.msk [vmem:[%s188] sm:$0xf] %vm433, %v425
      %435 = vst.msk [vmem:[%s188 + $0x4] sm:$0xf] %vm433, %v426
      %436 = vst.msk [vmem:[%s188 + $0x8] sm:$0xf] %vm433, %v427
      %437 = vst.msk [vmem:[%s188 + $0xc] sm:$0xf] %vm433, %v428
      %438 = vst.msk [vmem:[%s188 + $0x10] sm:$0xf] %vm433, %v429
      %439 = vst.msk [vmem:[%s188 + $0x14] sm:$0xf] %vm433, %v430
      %440 = vst.msk [vmem:[%s188 + $0x18] sm:$0xf] %vm433, %v431
      %441 = vst.msk [vmem:[%s188 + $0x1c] sm:$0xf] %vm433, %v432
      %s442 = smul.u32 8, %s19
      %p443 = scmp.lt.s32.totalorder %s17, 1
      %s444 = scalar_select %p443, %s17, 1
      %p445 = scmp.lt.s32.totalorder %s18, 3
      %s446 = scalar_select %p445, %s18, 3
      %p447 = scmp.lt.s32.totalorder %s442, 7
      %s448 = scalar_select %p447, %s442, 7
      %s449 = smul.addr %s446, 8
      %s450 = sadd.s32 %s448, %s449
      %s451 = smul.addr %s444, 32
      %s452 = sadd.s32 %s450, %s451
      %s453 = smul.addr %s452, 4
      %s454 = scalar_lea.vmem %s1, %s453
      // Predicated region
      $region25: #{a_call__.2} parent=23 // pred_check
        %p455 = pneg %p83
      $region26: #{a_call__.2} parent=23 // pred_check_branch
        %457 = sbr.rel (%p455) target = $region28
      $region27: #{a_call__.2} parent=23 // pred_region
        %s458 = smul.u32 8, %s19
      $region28: #{a_call__.2} parent=23 // pred_fallthru
        _
    $region24: #{a_call__.2} parent=5 // pred_fallthru
      _
    %p459 = scmp.le.s32.totalorder 2, %s7
    // Predicated region
    $region29: #{a_call__.2} parent=5 // pred_check
      %p460 = pneg %p459
    $region30: #{a_call__.2} parent=5 // pred_check_branch
      %462 = sbr.rel (%p460) target = $region32
    $region31: #{a_call__.2} parent=5 // pred_region
      %s463 = ssub.s32 %s7, 2
      // Predicated region
      $region33: #{a_call__.2} parent=31 // pred_check
        %p464 = pneg %p89
      $region34: #{a_call__.2} parent=31 // pred_check_branch
        %466 = sbr.rel (%p464) target = $region36
      $region35: #{a_call__.2} parent=31 // pred_region
        %s467 = smul.u32 8, %s22
        %p468 = scmp.lt.s32.totalorder %s20, 1
        %s469 = scalar_select %p468, %s20, 1
        %p470 = scmp.lt.s32.totalorder %s21, 3
        %s471 = scalar_select %p470, %s21, 3
        %p472 = scmp.lt.s32.totalorder %s467, 7
        %s473 = scalar_select %p472, %s467, 7
        %s474 = smul.addr %s471, 8
        %s475 = sadd.s32 %s473, %s474
        %s476 = smul.addr %s469, 32
        %s477 = sadd.s32 %s475, %s476
        %s478 = smul.addr %s477, 4
        %s479 = scalar_lea.vmem %s1, %s478
      $region36: #{a_call__.2} parent=31 // pred_fallthru
        _
    $region32: #{a_call__.2} parent=5 // pred_fallthru
      _
  $region6: #{a_call__.2} parent=0 // loop_footer
    %s11 = sadd.s32 1, %s7
  $region7: #{a_call__.2} parent=0 // loop_footer_branch
    %6 = sbr.rel target = $region3
  $region8: #{a_call__.2} parent=0 // loop_exit
    _

// kernel: a_call__.3
$region0: #{a_call__.3}
  #allocation0 [shape = 'u32[]', space=smem, size = 0x4, offset = 0x4, fixed_abs, tag = 'smem constant byte address 0x4 - core index']
  #allocation1 [shape = 'u32[72,128]{1,0:T(1,128)}', space=vmem, size = 0x9000, scoped, tag = 'internal scratch']
  #allocation2 [shape = 'bf16[10,10,4]{2,1,0:T(8,128)(2,1)}', space=vmem, size = 0xa000, scoped, tag = 'scratch operand']
  #allocation3 [shape = 'f32[64,4]{1,0:T(8,128)}', space=vmem, size = 0x8000, scoped, tag = 'scratch operand']
  %s0 = inlined_call_operand.vmem [shape: bf16[2,4,8,8,4], index: 0, kind: input, shape index: {}]
  %s1 = inlined_call_operand.vmem [shape: bf16[9,12,4], index: 1, kind: input, shape index: {}]
  %s2 = inlined_call_operand.vmem [shape: f32[1,4], index: 2, kind: input, shape index: {}]
  %s3 = inlined_call_operand.vmem [shape: f32[2,4,8,8,4], index: 3, kind: output, shape index: {}]
  %s4 = sld [smem:[#allocation0]]
  $region57: #{a_call__.3} parent=0
    _
  %s6 = ssub.s32 1, %s4
  %s7 = scalar_select 0, %s6, %s4
  loop: start=0, step=1, limit=26
  $region2: #{a_call__.3} parent=0 // loop_pre_header
    _
  $region3: #{a_call__.3} parent=0 // loop_header
    %s9 = sphi 0, %s13
    %p10 = scmp.ge.s32.totalorder %s9, 26
    %s16 = sphi 0, %s35
    %s17 = sphi 0, %s31
    %s18 = sphi 0, %s27
    %s19 = sphi 0, %s16
    %s20 = sphi 0, %s17
    %s21 = sphi 0, %s18
    %s22 = sphi 0, %s19
    %s23 = sphi 0, %s20
    %s24 = sphi 0, %s21
    %s48 = sphi 0, %s50
    %s51 = sphi 0, %s48
    %s52 = sphi 0, %s51
    %s68 = sphi 0, %s52
    %s72 = sphi 0, %s72
    %s74 = sphi 0, %s72
    %s75 = sphi 0, %s74
    %s89 = sphi 0, %s75
    %s93 = sphi 0, %s93
    %s95 = sphi 0, %s93
    %s96 = sphi 0, %s95
    %s110 = sphi 0, %s96
    %s118 = sphi 0, %s120
    %s121 = sphi 0, %s118
    %s122 = sphi 0, %s121
    %s138 = sphi 0, %s122
  $region4: #{a_call__.3} parent=0 // loop_header_branch
    %12 = sbr.rel (%p10) target = $region8
  $region5: #{a_call__.3} parent=0 // loop_body
    %s14 = ssub.s32 %s9, 1
    %s15 = ssub.s32 %s9, 2
    %s25 = sadd.s32 1, %s18
    %p26 = scmp.ge.s32.totalorder %s25, 3
    %s27 = scalar_select %p26, 0, %s25
    %s28 = sadd.s32 1, %s17
    %s29 = scalar_select %p26, %s28, %s17
    %p30 = scmp.ge.s32.totalorder %s29, 4
    %s31 = scalar_select %p30, 0, %s29
    %s32 = sadd.s32 1, %s16
    %s33 = scalar_select %p30, %s32, %s16
    %p34 = scmp.ge.s32.totalorder %s33, 2
    %s35 = scalar_select %p34, 0, %s33
    %s36 = sadd.s32 %s17, %s18
    %s37 = ssub.s32 %s36, 2
    %p38 = scmp.gt.s32.totalorder %s37, 0
    %s39 = scalar_select %p38, %s37, 0
    %s40 = sadd.s32 %s31, %s27
    %s41 = ssub.s32 %s40, 2
    %p42 = scmp.gt.s32.totalorder %s41, 0
    %s43 = scalar_select %p42, %s41, 0
    %s44 = ssub.s32 %s16, %s35
    %s45 = ssub.s32 %s39, %s43
    %s46 = sor.u32 %s44, %s45
    %p47 = scmp.eq.s32.totalorder %s46, 0
    %s49 = sadd.s32 %s48, 1
    %s50 = scalar_select %p47, %s48, %s49
    %p53 = pneg %p47
    %p54 = scmp.eq.s32.totalorder %s9, 23
    %p55 = por %p53, %p54
    %p56 = scmp.ne.s32.totalorder %s48, %s51
    %p57 = scmp.eq.s32.totalorder %s9, 0
    %p58 = por %p56, %p57
    %p59 = scmp.ne.s32.totalorder %s48, %s51
    %p60 = scmp.eq.s32.totalorder %s14, 23
    %p61 = por %p59, %p60
    %p62 = scmp.ne.s32.totalorder %s51, %s52
    %p63 = scmp.eq.s32.totalorder %s14, 0
    %p64 = por %p62, %p63
    %p65 = scmp.ne.s32.totalorder %s51, %s52
    %p66 = scmp.eq.s32.totalorder %s15, 23
    %p67 = por %p65, %p66
    %p69 = scmp.ne.s32.totalorder %s52, %s68
    %p70 = scmp.eq.s32.totalorder %s15, 0
    %p71 = por %p69, %p70
    %s73 = sadd.s32 %s72, 1
    %p76 = scmp.eq.s32.totalorder %s9, 23
    %p77 = scmp.ne.s32.totalorder %s72, %s74
    %p78 = scmp.eq.s32.totalorder %s9, 0
    %p79 = por %p77, %p78
    %p80 = scmp.ne.s32.totalorder %s72, %s74
    %p81 = scmp.eq.s32.totalorder %s14, 23
    %p82 = por %p80, %p81
    %p83 = scmp.ne.s32.totalorder %s74, %s75
    %p84 = scmp.eq.s32.totalorder %s14, 0
    %p85 = por %p83, %p84
    %p86 = scmp.ne.s32.totalorder %s74, %s75
    %p87 = scmp.eq.s32.totalorder %s15, 23
    %p88 = por %p86, %p87
    %p90 = scmp.ne.s32.totalorder %s75, %s89
    %p91 = scmp.eq.s32.totalorder %s15, 0
    %p92 = por %p90, %p91
    %s94 = sadd.s32 %s93, 1
    %p97 = scmp.eq.s32.totalorder %s9, 23
    %p98 = scmp.ne.s32.totalorder %s93, %s95
    %p99 = scmp.eq.s32.totalorder %s9, 0
    %p100 = por %p98, %p99
    %p101 = scmp.ne.s32.totalorder %s93, %s95
    %p102 = scmp.eq.s32.totalorder %s14, 23
    %p103 = por %p101, %p102
    %p104 = scmp.ne.s32.totalorder %s95, %s96
    %p105 = scmp.eq.s32.totalorder %s14, 0
    %p106 = por %p104, %p105
    %p107 = scmp.ne.s32.totalorder %s95, %s96
    %p108 = scmp.eq.s32.totalorder %s15, 23
    %p109 = por %p107, %p108
    %p111 = scmp.ne.s32.totalorder %s96, %s110
    %p112 = scmp.eq.s32.totalorder %s15, 0
    %p113 = por %p111, %p112
    %s114 = ssub.s32 %s16, %s35
    %s115 = ssub.s32 %s17, %s31
    %s116 = sor.u32 %s114, %s115
    %p117 = scmp.eq.s32.totalorder %s116, 0
    %s119 = sadd.s32 %s118, 1
    %s120 = scalar_select %p117, %s118, %s119
    %p123 = pneg %p117
    %p124 = scmp.eq.s32.totalorder %s9, 23
    %p125 = por %p123, %p124
    %p126 = scmp.ne.s32.totalorder %s118, %s121
    %p127 = scmp.eq.s32.totalorder %s9, 0
    %p128 = por %p126, %p127
    %p129 = scmp.ne.s32.totalorder %s118, %s121
    %p130 = scmp.eq.s32.totalorder %s14, 23
    %p131 = por %p129, %p130
    %p132 = scmp.ne.s32.totalorder %s121, %s122
    %p133 = scmp.eq.s32.totalorder %s14, 0
    %p134 = por %p132, %p133
    %p135 = scmp.ne.s32.totalorder %s121, %s122
    %p136 = scmp.eq.s32.totalorder %s15, 23
    %p137 = por %p135, %p136
    %p139 = scmp.ne.s32.totalorder %s122, %s138
    %p140 = scmp.eq.s32.totalorder %s15, 0
    %p141 = por %p139, %p140
    %p142 = scmp.le.s32.totalorder 1, %s9
    %p143 = scmp.lt.s32.totalorder %s9, 25
    %p144 = pnand %p142, %p143
    %p145 = pneg %p144
    // Predicated region
    $region9: #{a_call__.3} parent=5 // pred_check
      _
    $region10: #{a_call__.3} parent=5 // pred_check_branch
      %147 = sbr.rel (%p144) target = $region12
    $region11: #{a_call__.3} parent=5 // pred_region
      %s148 = ssub.s32 %s9, 1
      // Predicated region
      $region13: #{a_call__.3} parent=11 // pred_check
        %p149 = pneg %p85
      $region14: #{a_call__.3} parent=11 // pred_check_branch
        %151 = sbr.rel (%p149) target = $region16
      $region15: #{a_call__.3} parent=11 // pred_region
        _
      $region16: #{a_call__.3} parent=11 // pred_fallthru
        _
      // Predicated region
      $region17: #{a_call__.3} parent=11 // pred_check
        %p152 = pneg %p106
      $region18: #{a_call__.3} parent=11 // pred_check_branch
        %154 = sbr.rel (%p152) target = $region20
      $region19: #{a_call__.3} parent=11 // pred_region
        _
      $region20: #{a_call__.3} parent=11 // pred_fallthru
        _
    $region12: #{a_call__.3} parent=5 // pred_fallthru
      _
    %p155 = scmp.lt.s32.totalorder %s9, 24
    // Predicated region
    $region21: #{a_call__.3} parent=5 // pred_check
      %p156 = pneg %p155
    $region22: #{a_call__.3} parent=5 // pred_check_branch
      %158 = sbr.rel (%p156) target = $region24
    $region23: #{a_call__.3} parent=5 // pred_region
      // Predicated region
      $region25: #{a_call__.3} parent=23 // pred_check
        %p159 = pneg %p58
      $region26: #{a_call__.3} parent=23 // pred_check_branch
        %161 = sbr.rel (%p159) target = $region28
      $region27: #{a_call__.3} parent=23 // pred_region
        %s162 = sadd.s32 %s17, %s18
        %s163 = ssub.s32 %s162, 2
        %p164 = scmp.gt.s32.totalorder %s163, 0
        %s165 = scalar_select %p164, %s163, 0
        %p166 = scmp.lt.s32.totalorder %s16, 1
        %s167 = scalar_select %p166, %s16, 1
        %p168 = scmp.lt.s32.totalorder %s165, 3
        %s169 = scalar_select %p168, %s165, 3
        %s170 = smul.addr %s169, 8
        %s171 = smul.addr %s167, 32
        %s172 = sadd.s32 %s170, %s171
        %s173 = smul.addr %s172, 4
        %s174 = scalar_lea.vmem %s0, %s173
        %s175 = sadd.s32 %s17, %s18
        %s176 = ssub.s32 %s175, 2
        %p177 = scmp.gt.s32.totalorder %s176, 0
        %s178 = scalar_select %p177, %s176, 0
      $region28: #{a_call__.3} parent=23 // pred_fallthru
        _
    $region24: #{a_call__.3} parent=5 // pred_fallthru
      _
    %p179 = scmp.le.s32.totalorder 1, %s9
    %p180 = scmp.lt.s32.totalorder %s9, 25
    %p181 = pnand %p179, %p180
    %p182 = pneg %p181
    // Predicated region
    $region29: #{a_call__.3} parent=5 // pred_check
      _
    $region30: #{a_call__.3} parent=5 // pred_check_branch
      %184 = sbr.rel (%p181) target = $region32
    $region31: #{a_call__.3} parent=5 // pred_region
      %s185 = ssub.s32 %s9, 1
      %s186 = sadd.s32 %s20, %s21
      %s187 = ssub.s32 %s186, 2
      %p188 = scmp.gt.s32.totalorder %s187, 0
      %s189 = scalar_select %p188, %s187, 0
      %p190 = scmp.lt.s32.totalorder %s19, 1
      %s191 = scalar_select %p190, %s19, 1
      %p192 = scmp.lt.s32.totalorder %s189, 3
      %s193 = scalar_select %p192, %s189, 3
      %s194 = smul.addr %s193, 8
      %s195 = smul.addr %s191, 32
      %s196 = sadd.s32 %s194, %s195
      %s197 = smul.addr %s196, 4
      %s198 = scalar_lea.vmem %s0, %s197
      %p199 = pneg %p64
      %p200 = pneg %p61
      %p201 = pneg %p85
      %p202 = pneg %p82
      %p203 = pneg %p106
      %p204 = pneg %p103
      %p205 = pneg %p134
      %p206 = pneg %p131
      %p207 = scmp.lt.s32.totalorder %s19, 1
      %s208 = scalar_select %p207, %s19, 1
      %p209 = scmp.lt.s32.totalorder %s20, 3
      %s210 = scalar_select %p209, %s20, 3
      %s211 = smul.addr %s210, 8
      %s212 = smul.addr %s208, 32
      %s213 = sadd.s32 %s211, %s212
      %s214 = smul.addr %s213, 8
      %s215 = scalar_lea.vmem %s3, %s214
      %s216 = sadd.s32 %s20, %s21
      %s217 = ssub.s32 %s216, 2
      %p218 = scmp.gt.s32.totalorder %s217, 0
      %s219 = scalar_select %p218, %s217, 0
      %p220 = scmp.lt.s32.totalorder %s19, 1
      %s221 = scalar_select %p220, %s19, 1
      %p222 = scmp.lt.s32.totalorder %s219, 3
      %s223 = scalar_select %p222, %s219, 3
      %s224 = smul.addr %s223, 8
      %s225 = smul.addr %s221, 32
      %s226 = sadd.s32 %s224, %s225
      %s227 = smul.addr %s226, 4
      %s228 = scalar_lea.vmem %s0, %s227
      %s229 = sadd.s32 %s20, %s21
      %s230 = ssub.s32 %s229, 2
      %p231 = scmp.gt.s32.totalorder %s230, 0
      %s232 = scalar_select %p231, %s230, 0
      %p233 = scmp.lt.s32.totalorder %s19, 1
      %s234 = scalar_select %p233, %s19, 1
      %p235 = scmp.lt.s32.totalorder %s20, 3
      %s236 = scalar_select %p235, %s20, 3
      %s237 = smul.addr %s236, 8
      %s238 = smul.addr %s234, 32
      %s239 = sadd.s32 %s237, %s238
      %s240 = smul.addr %s239, 8
      %s241 = scalar_lea.vmem %s3, %s240
      %p243 = scmp.eq.s32.totalorder %s21, 0
      // Predicated region
      $region33: #{a_call__.3} parent=31 // pred_check
        %p244 = pneg %p243
      $region34: #{a_call__.3} parent=31 // pred_check_branch
        %246 = sbr.rel (%p244) target = $region36
      $region35: #{a_call__.3} parent=31 // pred_region
        %vm247 = vcmask 31744
        %248 = vst.msk [vmem:[#allocation3] sm:$0xff] %vm247, 0.0
        %249 = vst.msk [vmem:[#allocation3 + $0x8] sm:$0xff] %vm247, 0.0
        %250 = vst.msk [vmem:[#allocation3 + $0x10] sm:$0xff] %vm247, 0.0
        %251 = vst.msk [vmem:[#allocation3 + $0x18] sm:$0xff] %vm247, 0.0
        %252 = vst.msk [vmem:[#allocation3 + $0x20] sm:$0xff] %vm247, 0.0
        %253 = vst.msk [vmem:[#allocation3 + $0x28] sm:$0xff] %vm247, 0.0
        %254 = vst.msk [vmem:[#allocation3 + $0x30] sm:$0xff] %vm247, 0.0
        %255 = vst.msk [vmem:[#allocation3 + $0x38] sm:$0xff] %vm247, 0.0
        %vm256 = vcmask 27648
        %257 = vst.msk [vmem:[#allocation2] sm:$0xf] %vm256, 0
        %vm258 = vcmask 24576
        %259 = vst.msk [vmem:[#allocation2 + $0x4] sm:$0x1] %vm258, 0
        %260 = vst.msk [vmem:[#allocation2 + $0x8] sm:$0xf] %vm256, 0
        %261 = vst.msk [vmem:[#allocation2 + $0xc] sm:$0x1] %vm258, 0
        %262 = vst.msk [vmem:[#allocation2 + $0x10] sm:$0xf] %vm256, 0
        %263 = vst.msk [vmem:[#allocation2 + $0x14] sm:$0x1] %vm258, 0
        %264 = vst.msk [vmem:[#allocation2 + $0x18] sm:$0xf] %vm256, 0
        %265 = vst.msk [vmem:[#allocation2 + $0x1c] sm:$0x1] %vm258, 0
        %266 = vst.msk [vmem:[#allocation2 + $0x20] sm:$0xf] %vm256, 0
        %267 = vst.msk [vmem:[#allocation2 + $0x24] sm:$0x1] %vm258, 0
        %268 = vst.msk [vmem:[#allocation2 + $0x28] sm:$0xf] %vm256, 0
        %269 = vst.msk [vmem:[#allocation2 + $0x2c] sm:$0x1] %vm258, 0
        %270 = vst.msk [vmem:[#allocation2 + $0x30] sm:$0xf] %vm256, 0
        %271 = vst.msk [vmem:[#allocation2 + $0x34] sm:$0x1] %vm258, 0
        %272 = vst.msk [vmem:[#allocation2 + $0x38] sm:$0xf] %vm256, 0
        %273 = vst.msk [vmem:[#allocation2 + $0x3c] sm:$0x1] %vm258, 0
        %274 = vst.msk [vmem:[#allocation2 + $0x40] sm:$0xf] %vm256, 0
        %275 = vst.msk [vmem:[#allocation2 + $0x44] sm:$0x1] %vm258, 0
        %276 = vst.msk [vmem:[#allocation2 + $0x48] sm:$0xf] %vm256, 0
        %277 = vst.msk [vmem:[#allocation2 + $0x4c] sm:$0x1] %vm258, 0
      $region36: #{a_call__.3} parent=31 // pred_fallthru
        _
      %s278 = sadd.s32 %s20, %s21
      %p279 = scmp.ge.s32.totalorder %s278, 2
      // Predicated region
      $region37: #{a_call__.3} parent=31 // pred_check
        %p280 = pneg %p279
      $region38: #{a_call__.3} parent=31 // pred_check_branch
        %282 = sbr.rel (%p280) target = $region40
      $region39: #{a_call__.3} parent=31 // pred_region
        %v283 = vld [vmem:[%s228] sm:$0xf]
        %v284 = vld [vmem:[%s228 + $0x4] sm:$0xf]
        %v285 = vld [vmem:[%s228 + $0x8] sm:$0xf]
        %v286 = vld [vmem:[%s228 + $0xc] sm:$0xf]
        %v287 = vld [vmem:[%s228 + $0x10] sm:$0xf]
        %v288 = vld [vmem:[%s228 + $0x14] sm:$0xf]
        %v289 = vld [vmem:[%s228 + $0x18] sm:$0xf]
        %v290 = vld [vmem:[%s228 + $0x1c] sm:$0xf]
        %v292 = vshrl.u32 %v283, 16
        %v294 = vrot.slane %v292, 7
        %v295 = vshll.u32 %v283, 16
        %v297 = vor.u32 %v294, %v295
        %v298 = vrot.slane %v294, 4
        %v300 = vshrl.u32 %v284, 16
        %v302 = vrot.slane %v300, 7
        %v303 = vshll.u32 %v284, 16
        %v305 = vor.u32 %v302, %v303
        %v306 = vrot.slane %v302, 4
        %v308 = vshrl.u32 %v285, 16
        %v310 = vrot.slane %v308, 7
        %v311 = vshll.u32 %v285, 16
        %v313 = vor.u32 %v310, %v311
        %v314 = vrot.slane %v310, 4
        %v316 = vshrl.u32 %v286, 16
        %v318 = vrot.slane %v316, 7
        %v319 = vshll.u32 %v286, 16
        %v321 = vor.u32 %v318, %v319
        %v322 = vrot.slane %v318, 4
        %v324 = vshrl.u32 %v287, 16
        %v326 = vrot.slane %v324, 7
        %v327 = vshll.u32 %v287, 16
        %v329 = vor.u32 %v326, %v327
        %v330 = vrot.slane %v326, 4
        %v332 = vshrl.u32 %v288, 16
        %v334 = vrot.slane %v332, 7
        %v335 = vshll.u32 %v288, 16
        %v337 = vor.u32 %v334, %v335
        %v338 = vrot.slane %v334, 4
        %v340 = vshrl.u32 %v289, 16
        %v342 = vrot.slane %v340, 7
        %v343 = vshll.u32 %v289, 16
        %v345 = vor.u32 %v342, %v343
        %v346 = vrot.slane %v342, 4
        %v348 = vshrl.u32 %v290, 16
        %v350 = vrot.slane %v348, 7
        %v351 = vshll.u32 %v290, 16
        %v353 = vor.u32 %v350, %v351
        %v354 = vrot.slane %v350, 4
        %s371 = scalar_lea.vmem [#allocation2], 8
        %vm372 = vcmask 27648
        %vm373 = vsmask.f32 7938
        %vm374 = vmand %vm372, %vm373
        %v375 = vld [vmem:[%s371] sm:$0xf]
        %v376 = vsel %vm374, %v297, %v375
        %377 = vst [vmem:[%s371] sm:$0xf] %v376
        %vm378 = vcmask 24576
        %vm379 = vsmask.f32 256
        %vm380 = vmand %vm378, %vm379
        %v381 = vld [vmem:[%s371 + $0x4] sm:$0x1]
        %v382 = vsel %vm380, %v298, %v381
        %383 = vst [vmem:[%s371 + $0x4] sm:$0x1] %v382
        %v384 = vld [vmem:[%s371 + $0x8] sm:$0xf]
        %v385 = vsel %vm374, %v305, %v384
        %386 = vst [vmem:[%s371 + $0x8] sm:$0xf] %v385
        %v387 = vld [vmem:[%s371 + $0xc] sm:$0x1]
        %v388 = vsel %vm380, %v306, %v387
        %389 = vst [vmem:[%s371 + $0xc] sm:$0x1] %v388
        %v390 = vld [vmem:[%s371 + $0x10] sm:$0xf]
        %v391 = vsel %vm374, %v313, %v390
        %392 = vst [vmem:[%s371 + $0x10] sm:$0xf] %v391
        %v393 = vld [vmem:[%s371 + $0x14] sm:$0x1]
        %v394 = vsel %vm380, %v314, %v393
        %395 = vst [vmem:[%s371 + $0x14] sm:$0x1] %v394
        %v396 = vld [vmem:[%s371 + $0x18] sm:$0xf]
        %v397 = vsel %vm374, %v321, %v396
        %398 = vst [vmem:[%s371 + $0x18] sm:$0xf] %v397
        %v399 = vld [vmem:[%s371 + $0x1c] sm:$0x1]
        %v400 = vsel %vm380, %v322, %v399
        %401 = vst [vmem:[%s371 + $0x1c] sm:$0x1] %v400
        %v402 = vld [vmem:[%s371 + $0x20] sm:$0xf]
        %v403 = vsel %vm374, %v329, %v402
        %404 = vst [vmem:[%s371 + $0x20] sm:$0xf] %v403
        %v405 = vld [vmem:[%s371 + $0x24] sm:$0x1]
        %v406 = vsel %vm380, %v330, %v405
        %407 = vst [vmem:[%s371 + $0x24] sm:$0x1] %v406
        %v408 = vld [vmem:[%s371 + $0x28] sm:$0xf]
        %v409 = vsel %vm374, %v337, %v408
        %410 = vst [vmem:[%s371 + $0x28] sm:$0xf] %v409
        %v411 = vld [vmem:[%s371 + $0x2c] sm:$0x1]
        %v412 = vsel %vm380, %v338, %v411
        %413 = vst [vmem:[%s371 + $0x2c] sm:$0x1] %v412
        %v414 = vld [vmem:[%s371 + $0x30] sm:$0xf]
        %v415 = vsel %vm374, %v345, %v414
        %416 = vst [vmem:[%s371 + $0x30] sm:$0xf] %v415
        %v417 = vld [vmem:[%s371 + $0x34] sm:$0x1]
        %v418 = vsel %vm380, %v346, %v417
        %419 = vst [vmem:[%s371 + $0x34] sm:$0x1] %v418
        %v420 = vld [vmem:[%s371 + $0x38] sm:$0xf]
        %v421 = vsel %vm374, %v353, %v420
        %422 = vst [vmem:[%s371 + $0x38] sm:$0xf] %v421
        %v423 = vld [vmem:[%s371 + $0x3c] sm:$0x1]
        %v424 = vsel %vm380, %v354, %v423
        %425 = vst [vmem:[%s371 + $0x3c] sm:$0x1] %v424
        %v426 = vld [vmem:[#allocation2] sm:$0xf]
        %v427 = vld [vmem:[#allocation2 + $0x8] sm:$0xf]
        %v428 = vld [vmem:[#allocation2 + $0x10] sm:$0xf]
        %v429 = vld [vmem:[#allocation2 + $0x18] sm:$0xf]
        %v430 = vld [vmem:[#allocation2 + $0x20] sm:$0xf]
        %v431 = vld [vmem:[#allocation2 + $0x28] sm:$0xf]
        %v432 = vld [vmem:[#allocation2 + $0x30] sm:$0xf]
        %v433 = vld [vmem:[#allocation2 + $0x38] sm:$0xf]
        %v434 = vld [vmem:[#allocation2 + $0x4] sm:$0x1]
        %v435 = vld [vmem:[#allocation2 + $0xc] sm:$0x1]
        %v436 = vld [vmem:[#allocation2 + $0x14] sm:$0x1]
        %v437 = vld [vmem:[#allocation2 + $0x1c] sm:$0x1]
        %v438 = vld [vmem:[#allocation2 + $0x24] sm:$0x1]
        %v439 = vld [vmem:[#allocation2 + $0x2c] sm:$0x1]
        %v440 = vld [vmem:[#allocation2 + $0x34] sm:$0x1]
        %v441 = vld [vmem:[#allocation2 + $0x3c] sm:$0x1]
        %v442 = vld [vmem:[#allocation2] sm:$0xe]
        %v443 = vld [vmem:[#allocation2 + $0x8] sm:$0xe]
        %v444 = vld [vmem:[#allocation2 + $0x10] sm:$0xe]
        %v445 = vld [vmem:[#allocation2 + $0x18] sm:$0xe]
        %v446 = vld [vmem:[#allocation2 + $0x20] sm:$0xe]
        %v447 = vld [vmem:[#allocation2 + $0x28] sm:$0xe]
        %v448 = vld [vmem:[#allocation2 + $0x30] sm:$0xe]
        %v449 = vld [vmem:[#allocation2 + $0x38] sm:$0xe]
        %v466 = vunpack.c.l.b16 %v426
        %v467 = vunpack.c.l.b16 %v434
        %v468 = vunpack.c.l.b16 %v427
        %v469 = vunpack.c.l.b16 %v435
        %v470 = vunpack.c.l.b16 %v428
        %v471 = vunpack.c.l.b16 %v436
        %v472 = vunpack.c.l.b16 %v429
        %v473 = vunpack.c.l.b16 %v437
        %v474 = vunpack.c.l.b16 %v430
        %v475 = vunpack.c.l.b16 %v438
        %v476 = vunpack.c.l.b16 %v431
        %v477 = vunpack.c.l.b16 %v439
        %v478 = vunpack.c.l.b16 %v432
        %v479 = vunpack.c.l.b16 %v440
        %v480 = vunpack.c.l.b16 %v433
        %v481 = vunpack.c.l.b16 %v441
        %v482 = vpack.c.b16 %v467, %v466
        %v483 = vpack.c.b16 %v469, %v468
        %v484 = vpack.c.b16 %v471, %v470
        %v485 = vpack.c.b16 %v473, %v472
        %v486 = vpack.c.b16 %v475, %v474
        %v487 = vpack.c.b16 %v477, %v476
        %v488 = vpack.c.b16 %v479, %v478
        %v489 = vpack.c.b16 %v481, %v480
        %v491 = vshrl.u32 %v482, 16
        %v493 = vshll.u32 %v482, 16
        %v495 = vrot.slane %v493, 1
        %v496 = vor.u32 %v491, %v495
        %v498 = vshrl.u32 %v483, 16
        %v500 = vshll.u32 %v483, 16
        %v502 = vrot.slane %v500, 1
        %v503 = vor.u32 %v498, %v502
        %v505 = vshrl.u32 %v484, 16
        %v507 = vshll.u32 %v484, 16
        %v509 = vrot.slane %v507, 1
        %v510 = vor.u32 %v505, %v509
        %v512 = vshrl.u32 %v485, 16
        %v514 = vshll.u32 %v485, 16
        %v516 = vrot.slane %v514, 1
        %v517 = vor.u32 %v512, %v516
        %v519 = vshrl.u32 %v486, 16
        %v521 = vshll.u32 %v486, 16
        %v523 = vrot.slane %v521, 1
        %v524 = vor.u32 %v519, %v523
        %v526 = vshrl.u32 %v487, 16
        %v528 = vshll.u32 %v487, 16
        %v530 = vrot.slane %v528, 1
        %v531 = vor.u32 %v526, %v530
        %v533 = vshrl.u32 %v488, 16
        %v535 = vshll.u32 %v488, 16
        %v537 = vrot.slane %v535, 1
        %v538 = vor.u32 %v533, %v537
        %v540 = vshrl.u32 %v489, 16
        %v542 = vshll.u32 %v489, 16
        %v544 = vrot.slane %v542, 1
        %v545 = vor.u32 %v540, %v544
        %546 = vrot.lane.b32.xlu0 %v496, 4
        %v547 = vpop.permute.xlu0 %546
        %548 = vrot.lane.b32.xlu0 %v503, 4
        %v549 = vpop.permute.xlu0 %548
        %550 = vrot.lane.b32.xlu0 %v510, 4
        %v551 = vpop.permute.xlu0 %550
        %552 = vrot.lane.b32.xlu0 %v517, 4
        %v553 = vpop.permute.xlu0 %552
        %554 = vrot.lane.b32.xlu0 %v524, 4
        %v555 = vpop.permute.xlu0 %554
        %556 = vrot.lane.b32.xlu0 %v531, 4
        %v557 = vpop.permute.xlu0 %556
        %558 = vrot.lane.b32.xlu0 %v538, 4
        %v559 = vpop.permute.xlu0 %558
        %560 = vrot.lane.b32.xlu0 %v545, 4
        %v561 = vpop.permute.xlu0 %560
        %v570 = vunpack.c.l.b16 %v442
        %v571 = vunpack.c.l.b16 %v443
        %v572 = vunpack.c.l.b16 %v444
        %v573 = vunpack.c.l.b16 %v445
        %v574 = vunpack.c.l.b16 %v446
        %v575 = vunpack.c.l.b16 %v447
        %v576 = vunpack.c.l.b16 %v448
        %v577 = vunpack.c.l.b16 %v449
        %v578 = vpack.c.b16 %v467, %v570
        %v579 = vpack.c.b16 %v469, %v571
        %v580 = vpack.c.b16 %v471, %v572
        %v581 = vpack.c.b16 %v473, %v573
        %v582 = vpack.c.b16 %v475, %v574
        %v583 = vpack.c.b16 %v477, %v575
        %v584 = vpack.c.b16 %v479, %v576
        %v585 = vpack.c.b16 %v481, %v577
        %v586 = vrot.slane %v578, 1
        %v587 = vrot.slane %v579, 1
        %v588 = vrot.slane %v580, 1
        %v589 = vrot.slane %v581, 1
        %v590 = vrot.slane %v582, 1
        %v591 = vrot.slane %v583, 1
        %v592 = vrot.slane %v584, 1
        %v593 = vrot.slane %v585, 1
        %594 = vrot.lane.b32.xlu0 %v586, 8
        %v595 = vpop.permute.xlu0 %594
        %596 = vrot.lane.b32.xlu0 %v587, 8
        %v597 = vpop.permute.xlu0 %596
        %598 = vrot.lane.b32.xlu0 %v588, 8
        %v599 = vpop.permute.xlu0 %598
        %600 = vrot.lane.b32.xlu0 %v589, 8
        %v601 = vpop.permute.xlu0 %600
        %602 = vrot.lane.b32.xlu0 %v590, 8
        %v603 = vpop.permute.xlu0 %602
        %604 = vrot.lane.b32.xlu0 %v591, 8
        %v605 = vpop.permute.xlu0 %604
        %606 = vrot.lane.b32.xlu0 %v592, 8
        %v607 = vpop.permute.xlu0 %606
        %608 = vrot.lane.b32.xlu0 %v593, 8
        %v609 = vpop.permute.xlu0 %608
        %vm610 = vcmask 31744
        %v613 = vsel %vm610, %v426, %v547
        %v616 = vsel %vm610, %v427, %v549
        %v619 = vsel %vm610, %v428, %v551
        %v622 = vsel %vm610, %v429, %v553
        %v625 = vsel %vm610, %v430, %v555
        %v628 = vsel %vm610, %v431, %v557
        %v631 = vsel %vm610, %v432, %v559
        %v634 = vsel %vm610, %v433, %v561
        %vm635 = vcmask 64512
        %v637 = vsel %vm635, %v613, %v595
        %v639 = vsel %vm635, %v616, %v597
        %v641 = vsel %vm635, %v619, %v599
        %v643 = vsel %vm635, %v622, %v601
        %v645 = vsel %vm635, %v625, %v603
        %v647 = vsel %vm635, %v628, %v605
        %v649 = vsel %vm635, %v631, %v607
        %v651 = vsel %vm635, %v634, %v609
        %s652 = smul.u32 %s21, 3
        %s653 = smul.u32 %s652, 2
        %s654 = smul.addr %s653, 4
        %s655 = scalar_lea.vmem %s1, %s654
        %v656 = vld [vmem:[%s655] sm:$0xf]
        %v657 = vld [vmem:[%s655 + $0x4] sm:$0x3]
        %v658 = vld [vmem:[%s371] sm:$0xf]
        %v659 = vld [vmem:[%s371 + $0x8] sm:$0xf]
        %v660 = vld [vmem:[%s371 + $0x10] sm:$0xf]
        %v661 = vld [vmem:[%s371 + $0x18] sm:$0xf]
        %v662 = vld [vmem:[%s371 + $0x20] sm:$0xf]
        %v663 = vld [vmem:[%s371 + $0x28] sm:$0xf]
        %v664 = vld [vmem:[%s371 + $0x30] sm:$0xf]
        %v665 = vld [vmem:[%s371 + $0x38] sm:$0xf]
        %v666 = vld [vmem:[%s371 + $0x4] sm:$0x1]
        %v667 = vld [vmem:[%s371 + $0xc] sm:$0x1]
        %v668 = vld [vmem:[%s371 + $0x14] sm:$0x1]
        %v669 = vld [vmem:[%s371 + $0x1c] sm:$0x1]
        %v670 = vld [vmem:[%s371 + $0x24] sm:$0x1]
        %v671 = vld [vmem:[%s371 + $0x2c] sm:$0x1]
        %v672 = vld [vmem:[%s371 + $0x34] sm:$0x1]
        %v673 = vld [vmem:[%s371 + $0x3c] sm:$0x1]
        %v674 = vld [vmem:[%s371] sm:$0xe]
        %v675 = vld [vmem:[%s371 + $0x8] sm:$0xe]
        %v676 = vld [vmem:[%s371 + $0x10] sm:$0xe]
        %v677 = vld [vmem:[%s371 + $0x18] sm:$0xe]
        %v678 = vld [vmem:[%s371 + $0x20] sm:$0xe]
        %v679 = vld [vmem:[%s371 + $0x28] sm:$0xe]
        %v680 = vld [vmem:[%s371 + $0x30] sm:$0xe]
        %v681 = vld [vmem:[%s371 + $0x38] sm:$0xe]
        %v698 = vunpack.c.l.b16 %v658
        %v699 = vunpack.c.l.b16 %v666
        %v700 = vunpack.c.l.b16 %v659
        %v701 = vunpack.c.l.b16 %v667
        %v702 = vunpack.c.l.b16 %v660
        %v703 = vunpack.c.l.b16 %v668
        %v704 = vunpack.c.l.b16 %v661
        %v705 = vunpack.c.l.b16 %v669
        %v706 = vunpack.c.l.b16 %v662
        %v707 = vunpack.c.l.b16 %v670
        %v708 = vunpack.c.l.b16 %v663
        %v709 = vunpack.c.l.b16 %v671
        %v710 = vunpack.c.l.b16 %v664
        %v711 = vunpack.c.l.b16 %v672
        %v712 = vunpack.c.l.b16 %v665
        %v713 = vunpack.c.l.b16 %v673
        %v714 = vpack.c.b16 %v699, %v698
        %v715 = vpack.c.b16 %v701, %v700
        %v716 = vpack.c.b16 %v703, %v702
        %v717 = vpack.c.b16 %v705, %v704
        %v718 = vpack.c.b16 %v707, %v706
        %v719 = vpack.c.b16 %v709, %v708
        %v720 = vpack.c.b16 %v711, %v710
        %v721 = vpack.c.b16 %v713, %v712
        %v723 = vshrl.u32 %v714, 16
        %v725 = vshll.u32 %v714, 16
        %v727 = vrot.slane %v725, 1
        %v728 = vor.u32 %v723, %v727
        %v730 = vshrl.u32 %v715, 16
        %v732 = vshll.u32 %v715, 16
        %v734 = vrot.slane %v732, 1
        %v735 = vor.u32 %v730, %v734
        %v737 = vshrl.u32 %v716, 16
        %v739 = vshll.u32 %v716, 16
        %v741 = vrot.slane %v739, 1
        %v742 = vor.u32 %v737, %v741
        %v744 = vshrl.u32 %v717, 16
        %v746 = vshll.u32 %v717, 16
        %v748 = vrot.slane %v746, 1
        %v749 = vor.u32 %v744, %v748
        %v751 = vshrl.u32 %v718, 16
        %v753 = vshll.u32 %v718, 16
        %v755 = vrot.slane %v753, 1
        %v756 = vor.u32 %v751, %v755
        %v758 = vshrl.u32 %v719, 16
        %v760 = vshll.u32 %v719, 16
        %v762 = vrot.slane %v760, 1
        %v763 = vor.u32 %v758, %v762
        %v765 = vshrl.u32 %v720, 16
        %v767 = vshll.u32 %v720, 16
        %v769 = vrot.slane %v767, 1
        %v770 = vor.u32 %v765, %v769
        %v772 = vshrl.u32 %v721, 16
        %v774 = vshll.u32 %v721, 16
        %v776 = vrot.slane %v774, 1
        %v777 = vor.u32 %v772, %v776
        %778 = vrot.lane.b32.xlu0 %v728, 4
        %v779 = vpop.permute.xlu0 %778
        %780 = vrot.lane.b32.xlu0 %v735, 4
        %v781 = vpop.permute.xlu0 %780
        %782 = vrot.lane.b32.xlu0 %v742, 4
        %v783 = vpop.permute.xlu0 %782
        %784 = vrot.lane.b32.xlu0 %v749, 4
        %v785 = vpop.permute.xlu0 %784
        %786 = vrot.lane.b32.xlu0 %v756, 4
        %v787 = vpop.permute.xlu0 %786
        %788 = vrot.lane.b32.xlu0 %v763, 4
        %v789 = vpop.permute.xlu0 %788
        %790 = vrot.lane.b32.xlu0 %v770, 4
        %v791 = vpop.permute.xlu0 %790
        %792 = vrot.lane.b32.xlu0 %v777, 4
        %v793 = vpop.permute.xlu0 %792
        %v802 = vunpack.c.l.b16 %v674
        %v803 = vunpack.c.l.b16 %v675
        %v804 = vunpack.c.l.b16 %v676
        %v805 = vunpack.c.l.b16 %v677
        %v806 = vunpack.c.l.b16 %v678
        %v807 = vunpack.c.l.b16 %v679
        %v808 = vunpack.c.l.b16 %v680
        %v809 = vunpack.c.l.b16 %v681
        %v810 = vpack.c.b16 %v699, %v802
        %v811 = vpack.c.b16 %v701, %v803
        %v812 = vpack.c.b16 %v703, %v804
        %v813 = vpack.c.b16 %v705, %v805
        %v814 = vpack.c.b16 %v707, %v806
        %v815 = vpack.c.b16 %v709, %v807
        %v816 = vpack.c.b16 %v711, %v808
        %v817 = vpack.c.b16 %v713, %v809
        %v818 = vrot.slane %v810, 1
        %v819 = vrot.slane %v811, 1
        %v820 = vrot.slane %v812, 1
        %v821 = vrot.slane %v813, 1
        %v822 = vrot.slane %v814, 1
        %v823 = vrot.slane %v815, 1
        %v824 = vrot.slane %v816, 1
        %v825 = vrot.slane %v817, 1
        %826 = vrot.lane.b32.xlu0 %v818, 8
        %v827 = vpop.permute.xlu0 %826
        %828 = vrot.lane.b32.xlu0 %v819, 8
        %v829 = vpop.permute.xlu0 %828
        %830 = vrot.lane.b32.xlu0 %v820, 8
        %v831 = vpop.permute.xlu0 %830
        %832 = vrot.lane.b32.xlu0 %v821, 8
        %v833 = vpop.permute.xlu0 %832
        %834 = vrot.lane.b32.xlu0 %v822, 8
        %v835 = vpop.permute.xlu0 %834
        %836 = vrot.lane.b32.xlu0 %v823, 8
        %v837 = vpop.permute.xlu0 %836
        %838 = vrot.lane.b32.xlu0 %v824, 8
        %v839 = vpop.permute.xlu0 %838
        %840 = vrot.lane.b32.xlu0 %v825, 8
        %v841 = vpop.permute.xlu0 %840
        %v844 = vsel %vm610, %v658, %v779
        %v847 = vsel %vm610, %v659, %v781
        %v850 = vsel %vm610, %v660, %v783
        %v853 = vsel %vm610, %v661, %v785
        %v856 = vsel %vm610, %v662, %v787
        %v859 = vsel %vm610, %v663, %v789
        %v862 = vsel %vm610, %v664, %v791
        %v865 = vsel %vm610, %v665, %v793
        %v867 = vsel %vm635, %v844, %v827
        %v869 = vsel %vm635, %v847, %v829
        %v871 = vsel %vm635, %v850, %v831
        %v873 = vsel %vm635, %v853, %v833
        %v875 = vsel %vm635, %v856, %v835
        %v877 = vsel %vm635, %v859, %v837
        %v879 = vsel %vm635, %v862, %v839
        %v881 = vsel %vm635, %v865, %v841
        %s882 = sadd.s32 %s652, 1
        %s883 = smul.u32 %s882, 2
        %s884 = smul.addr %s883, 4
        %s885 = scalar_lea.vmem %s1, %s884
        %v886 = vld [vmem:[%s885] sm:$0xf]
        %v887 = vld [vmem:[%s885 + $0x4] sm:$0x3]
        %v896 = vunpack.c.l.b16 %v867
        %v897 = vunpack.c.l.b16 %v869
        %v898 = vunpack.c.l.b16 %v871
        %v899 = vunpack.c.l.b16 %v873
        %v900 = vunpack.c.l.b16 %v875
        %v901 = vunpack.c.l.b16 %v877
        %v902 = vunpack.c.l.b16 %v879
        %v903 = vunpack.c.l.b16 %v881
        %v904 = vpack.c.b16 %v897, %v896
        %v905 = vpack.c.b16 %v899, %v898
        %v906 = vpack.c.b16 %v901, %v900
        %v907 = vpack.c.b16 %v903, %v902
        %v910 = vunpack.c.l.b16 %v886
        %v911 = vunpack.c.l.b16 %v887
        %v912 = vpack.c.b16 %v911, %v910
        %vm913 = vcmask 97280
        %v915 = vsel %vm913, %v904, 0
        %v918 = vsel %vm913, %v905, 0
        %v921 = vsel %vm913, %v906, 0
        %v924 = vsel %vm913, %v907, 0
        %vm926 = vcmask 1045504
        %v928 = vsel %vm926, %v912, 0
        %930 = vmatpush.bf16.msra.mxu0 0
        %931 = vmatpush.bf16.msra.mxu0 0
        %932 = vmatpush.bf16.msra.mxu0 0
        %933 = vmatpush.bf16.msra.mxu0 0
        %934 = vmatpush.bf16.msra.mxu0 0
        %935 = vmatpush.bf16.msra.mxu0 0
        %936 = vmatpush.bf16.msra.mxu0 0
        %937 = vmatpush.bf16.msra.mxu0 %v928
        %938 = vmatmul.bf16.gmra.mxu0 %v915
        %v939 = vpop.f32.mrf.mxu0
        %v940 = vadd.f32 0.0, %v939
        %v941 = vpop.f32.mrf.mxu0
        %v942 = vadd.f32 0.0, %v941
        %943 = vmatmul.bf16.gmra.mxu0 %v918
        %v944 = vpop.f32.mrf.mxu0
        %v945 = vadd.f32 0.0, %v944
        %v946 = vpop.f32.mrf.mxu0
        %v947 = vadd.f32 0.0, %v946
        %948 = vmatmul.bf16.gmra.mxu0 %v921
        %v949 = vpop.f32.mrf.mxu0
        %v950 = vadd.f32 0.0, %v949
        %v951 = vpop.f32.mrf.mxu0
        %v952 = vadd.f32 0.0, %v951
        %953 = vmatmul.bf16.gmra.mxu0 %v924
        %v954 = vpop.f32.mrf.mxu0
        %v955 = vadd.f32 0.0, %v954
        %v956 = vpop.f32.mrf.mxu0
        %v957 = vadd.f32 0.0, %v956
        %958 = vdwg.mxu0
        %v967 = vunpack.c.l.b16 %v637
        %v968 = vunpack.c.l.b16 %v639
        %v969 = vunpack.c.l.b16 %v641
        %v970 = vunpack.c.l.b16 %v643
        %v971 = vunpack.c.l.b16 %v645
        %v972 = vunpack.c.l.b16 %v647
        %v973 = vunpack.c.l.b16 %v649
        %v974 = vunpack.c.l.b16 %v651
        %v975 = vpack.c.b16 %v968, %v967
        %v976 = vpack.c.b16 %v970, %v969
        %v977 = vpack.c.b16 %v972, %v971
        %v978 = vpack.c.b16 %v974, %v973
        %v981 = vunpack.c.l.b16 %v656
        %v982 = vunpack.c.l.b16 %v657
        %v983 = vpack.c.b16 %v982, %v981
        %v985 = vsel %vm913, %v975, 0
        %v988 = vsel %vm913, %v976, 0
        %v991 = vsel %vm913, %v977, 0
        %v994 = vsel %vm913, %v978, 0
        %v997 = vsel %vm926, %v983, 0
        %999 = vmatpush.bf16.msra.mxu0 0
        %1000 = vmatpush.bf16.msra.mxu0 0
        %1001 = vmatpush.bf16.msra.mxu0 0
        %1002 = vmatpush.bf16.msra.mxu0 0
        %1003 = vmatpush.bf16.msra.mxu0 0
        %1004 = vmatpush.bf16.msra.mxu0 0
        %1005 = vmatpush.bf16.msra.mxu0 0
        %1006 = vmatpush.bf16.msra.mxu0 %v997
        %1007 = vmatmul.bf16.gmra.mxu0 %v985
        %v1008 = vpop.f32.mrf.mxu0
        %v1009 = vadd.f32 %v940, %v1008
        %v1010 = vpop.f32.mrf.mxu0
        %v1011 = vadd.f32 %v942, %v1010
        %1012 = vmatmul.bf16.gmra.mxu0 %v988
        %v1013 = vpop.f32.mrf.mxu0
        %v1014 = vadd.f32 %v945, %v1013
        %v1015 = vpop.f32.mrf.mxu0
        %v1016 = vadd.f32 %v947, %v1015
        %1017 = vmatmul.bf16.gmra.mxu0 %v991
        %v1018 = vpop.f32.mrf.mxu0
        %v1019 = vadd.f32 %v950, %v1018
        %v1020 = vpop.f32.mrf.mxu0
        %v1021 = vadd.f32 %v952, %v1020
        %1022 = vmatmul.bf16.gmra.mxu0 %v994
        %v1023 = vpop.f32.mrf.mxu0
        %v1024 = vadd.f32 %v955, %v1023
        %v1025 = vpop.f32.mrf.mxu0
        %v1026 = vadd.f32 %v957, %v1025
        %1027 = vdwg.mxu0
        %s1028 = scalar_lea.vmem [#allocation2], 16
        %v1029 = vld [vmem:[%s1028] sm:$0xf]
        %v1030 = vld [vmem:[%s1028 + $0x8] sm:$0xf]
        %v1031 = vld [vmem:[%s1028 + $0x10] sm:$0xf]
        %v1032 = vld [vmem:[%s1028 + $0x18] sm:$0xf]
        %v1033 = vld [vmem:[%s1028 + $0x20] sm:$0xf]
        %v1034 = vld [vmem:[%s1028 + $0x28] sm:$0xf]
        %v1035 = vld [vmem:[%s1028 + $0x30] sm:$0xf]
        %v1036 = vld [vmem:[%s1028 + $0x38] sm:$0xf]
        %v1037 = vld [vmem:[%s1028 + $0x4] sm:$0x1]
        %v1038 = vld [vmem:[%s1028 + $0xc] sm:$0x1]
        %v1039 = vld [vmem:[%s1028 + $0x14] sm:$0x1]
        %v1040 = vld [vmem:[%s1028 + $0x1c] sm:$0x1]
        %v1041 = vld [vmem:[%s1028 + $0x24] sm:$0x1]
        %v1042 = vld [vmem:[%s1028 + $0x2c] sm:$0x1]
        %v1043 = vld [vmem:[%s1028 + $0x34] sm:$0x1]
        %v1044 = vld [vmem:[%s1028 + $0x3c] sm:$0x1]
        %v1045 = vld [vmem:[%s1028] sm:$0xe]
        %v1046 = vld [vmem:[%s1028 + $0x8] sm:$0xe]
        %v1047 = vld [vmem:[%s1028 + $0x10] sm:$0xe]
        %v1048 = vld [vmem:[%s1028 + $0x18] sm:$0xe]
        %v1049 = vld [vmem:[%s1028 + $0x20] sm:$0xe]
        %v1050 = vld [vmem:[%s1028 + $0x28] sm:$0xe]
        %v1051 = vld [vmem:[%s1028 + $0x30] sm:$0xe]
        %v1052 = vld [vmem:[%s1028 + $0x38] sm:$0xe]
        %v1069 = vunpack.c.l.b16 %v1029
        %v1070 = vunpack.c.l.b16 %v1037
        %v1071 = vunpack.c.l.b16 %v1030
        %v1072 = vunpack.c.l.b16 %v1038
        %v1073 = vunpack.c.l.b16 %v1031
        %v1074 = vunpack.c.l.b16 %v1039
        %v1075 = vunpack.c.l.b16 %v1032
        %v1076 = vunpack.c.l.b16 %v1040
        %v1077 = vunpack.c.l.b16 %v1033
        %v1078 = vunpack.c.l.b16 %v1041
        %v1079 = vunpack.c.l.b16 %v1034
        %v1080 = vunpack.c.l.b16 %v1042
        %v1081 = vunpack.c.l.b16 %v1035
        %v1082 = vunpack.c.l.b16 %v1043
        %v1083 = vunpack.c.l.b16 %v1036
        %v1084 = vunpack.c.l.b16 %v1044
        %v1085 = vpack.c.b16 %v1070, %v1069
        %v1086 = vpack.c.b16 %v1072, %v1071
        %v1087 = vpack.c.b16 %v1074, %v1073
        %v1088 = vpack.c.b16 %v1076, %v1075
        %v1089 = vpack.c.b16 %v1078, %v1077
        %v1090 = vpack.c.b16 %v1080, %v1079
        %v1091 = vpack.c.b16 %v1082, %v1081
        %v1092 = vpack.c.b16 %v1084, %v1083
        %v1094 = vshrl.u32 %v1085, 16
        %v1096 = vshll.u32 %v1085, 16
        %v1098 = vrot.slane %v1096, 1
        %v1099 = vor.u32 %v1094, %v1098
        %v1101 = vshrl.u32 %v1086, 16
        %v1103 = vshll.u32 %v1086, 16
        %v1105 = vrot.slane %v1103, 1
        %v1106 = vor.u32 %v1101, %v1105
        %v1108 = vshrl.u32 %v1087, 16
        %v1110 = vshll.u32 %v1087, 16
        %v1112 = vrot.slane %v1110, 1
        %v1113 = vor.u32 %v1108, %v1112
        %v1115 = vshrl.u32 %v1088, 16
        %v1117 = vshll.u32 %v1088, 16
        %v1119 = vrot.slane %v1117, 1
        %v1120 = vor.u32 %v1115, %v1119
        %v1122 = vshrl.u32 %v1089, 16
        %v1124 = vshll.u32 %v1089, 16
        %v1126 = vrot.slane %v1124, 1
        %v1127 = vor.u32 %v1122, %v1126
        %v1129 = vshrl.u32 %v1090, 16
        %v1131 = vshll.u32 %v1090, 16
        %v1133 = vrot.slane %v1131, 1
        %v1134 = vor.u32 %v1129, %v1133
        %v1136 = vshrl.u32 %v1091, 16
        %v1138 = vshll.u32 %v1091, 16
        %v1140 = vrot.slane %v1138, 1
        %v1141 = vor.u32 %v1136, %v1140
        %v1143 = vshrl.u32 %v1092, 16
        %v1145 = vshll.u32 %v1092, 16
        %v1147 = vrot.slane %v1145, 1
        %v1148 = vor.u32 %v1143, %v1147
        %1149 = vrot.lane.b32.xlu0 %v1099, 4
        %v1150 = vpop.permute.xlu0 %1149
        %1151 = vrot.lane.b32.xlu0 %v1106, 4
        %v1152 = vpop.permute.xlu0 %1151
        %1153 = vrot.lane.b32.xlu0 %v1113, 4
        %v1154 = vpop.permute.xlu0 %1153
        %1155 = vrot.lane.b32.xlu0 %v1120, 4
        %v1156 = vpop.permute.xlu0 %1155
        %1157 = vrot.lane.b32.xlu0 %v1127, 4
        %v1158 = vpop.permute.xlu0 %1157
        %1159 = vrot.lane.b32.xlu0 %v1134, 4
        %v1160 = vpop.permute.xlu0 %1159
        %1161 = vrot.lane.b32.xlu0 %v1141, 4
        %v1162 = vpop.permute.xlu0 %1161
        %1163 = vrot.lane.b32.xlu0 %v1148, 4
        %v1164 = vpop.permute.xlu0 %1163
        %v1173 = vunpack.c.l.b16 %v1045
        %v1174 = vunpack.c.l.b16 %v1046
        %v1175 = vunpack.c.l.b16 %v1047
        %v1176 = vunpack.c.l.b16 %v1048
        %v1177 = vunpack.c.l.b16 %v1049
        %v1178 = vunpack.c.l.b16 %v1050
        %v1179 = vunpack.c.l.b16 %v1051
        %v1180 = vunpack.c.l.b16 %v1052
        %v1181 = vpack.c.b16 %v1070, %v1173
        %v1182 = vpack.c.b16 %v1072, %v1174
        %v1183 = vpack.c.b16 %v1074, %v1175
        %v1184 = vpack.c.b16 %v1076, %v1176
        %v1185 = vpack.c.b16 %v1078, %v1177
        %v1186 = vpack.c.b16 %v1080, %v1178
        %v1187 = vpack.c.b16 %v1082, %v1179
        %v1188 = vpack.c.b16 %v1084, %v1180
        %v1189 = vrot.slane %v1181, 1
        %v1190 = vrot.slane %v1182, 1
        %v1191 = vrot.slane %v1183, 1
        %v1192 = vrot.slane %v1184, 1
        %v1193 = vrot.slane %v1185, 1
        %v1194 = vrot.slane %v1186, 1
        %v1195 = vrot.slane %v1187, 1
        %v1196 = vrot.slane %v1188, 1
        %1197 = vrot.lane.b32.xlu0 %v1189, 8
        %v1198 = vpop.permute.xlu0 %1197
        %1199 = vrot.lane.b32.xlu0 %v1190, 8
        %v1200 = vpop.permute.xlu0 %1199
        %1201 = vrot.lane.b32.xlu0 %v1191, 8
        %v1202 = vpop.permute.xlu0 %1201
        %1203 = vrot.lane.b32.xlu0 %v1192, 8
        %v1204 = vpop.permute.xlu0 %1203
        %1205 = vrot.lane.b32.xlu0 %v1193, 8
        %v1206 = vpop.permute.xlu0 %1205
        %1207 = vrot.lane.b32.xlu0 %v1194, 8
        %v1208 = vpop.permute.xlu0 %1207
        %1209 = vrot.lane.b32.xlu0 %v1195, 8
        %v1210 = vpop.permute.xlu0 %1209
        %1211 = vrot.lane.b32.xlu0 %v1196, 8
        %v1212 = vpop.permute.xlu0 %1211
        %v1215 = vsel %vm610, %v1029, %v1150
        %v1218 = vsel %vm610, %v1030, %v1152
        %v1221 = vsel %vm610, %v1031, %v1154
        %v1224 = vsel %vm610, %v1032, %v1156
        %v1227 = vsel %vm610, %v1033, %v1158
        %v1230 = vsel %vm610, %v1034, %v1160
        %v1233 = vsel %vm610, %v1035, %v1162
        %v1236 = vsel %vm610, %v1036, %v1164
        %v1238 = vsel %vm635, %v1215, %v1198
        %v1240 = vsel %vm635, %v1218, %v1200
        %v1242 = vsel %vm635, %v1221, %v1202
        %v1244 = vsel %vm635, %v1224, %v1204
        %v1246 = vsel %vm635, %v1227, %v1206
        %v1248 = vsel %vm635, %v1230, %v1208
        %v1250 = vsel %vm635, %v1233, %v1210
        %v1252 = vsel %vm635, %v1236, %v1212
        %s1253 = sadd.s32 %s652, 2
        %s1254 = smul.u32 %s1253, 2
        %s1255 = smul.addr %s1254, 4
        %s1256 = scalar_lea.vmem %s1, %s1255
        %v1257 = vld [vmem:[%s1256] sm:$0xf]
        %v1258 = vld [vmem:[%s1256 + $0x4] sm:$0x3]
        %v1267 = vunpack.c.l.b16 %v1238
        %v1268 = vunpack.c.l.b16 %v1240
        %v1269 = vunpack.c.l.b16 %v1242
        %v1270 = vunpack.c.l.b16 %v1244
        %v1271 = vunpack.c.l.b16 %v1246
        %v1272 = vunpack.c.l.b16 %v1248
        %v1273 = vunpack.c.l.b16 %v1250
        %v1274 = vunpack.c.l.b16 %v1252
        %v1275 = vpack.c.b16 %v1268, %v1267
        %v1276 = vpack.c.b16 %v1270, %v1269
        %v1277 = vpack.c.b16 %v1272, %v1271
        %v1278 = vpack.c.b16 %v1274, %v1273
        %v1281 = vunpack.c.l.b16 %v1257
        %v1282 = vunpack.c.l.b16 %v1258
        %v1283 = vpack.c.b16 %v1282, %v1281
        %v1285 = vsel %vm913, %v1275, 0
        %v1288 = vsel %vm913, %v1276, 0
        %v1291 = vsel %vm913, %v1277, 0
        %v1294 = vsel %vm913, %v1278, 0
        %v1297 = vsel %vm926, %v1283, 0
        %1299 = vmatpush.bf16.msra.mxu0 0
        %1300 = vmatpush.bf16.msra.mxu0 0
        %1301 = vmatpush.bf16.msra.mxu0 0
        %1302 = vmatpush.bf16.msra.mxu0 0
        %1303 = vmatpush.bf16.msra.mxu0 0
        %1304 = vmatpush.bf16.msra.mxu0 0
        %1305 = vmatpush.bf16.msra.mxu0 0
        %1306 = vmatpush.bf16.msra.mxu0 %v1297
        %1307 = vmatmul.bf16.gmra.mxu0 %v1285
        %v1308 = vpop.f32.mrf.mxu0
        %v1309 = vadd.f32 0.0, %v1308
        %v1310 = vpop.f32.mrf.mxu0
        %v1311 = vadd.f32 0.0, %v1310
        %1312 = vmatmul.bf16.gmra.mxu0 %v1288
        %v1313 = vpop.f32.mrf.mxu0
        %v1314 = vadd.f32 0.0, %v1313
        %v1315 = vpop.f32.mrf.mxu0
        %v1316 = vadd.f32 0.0, %v1315
        %1317 = vmatmul.bf16.gmra.mxu0 %v1291
        %v1318 = vpop.f32.mrf.mxu0
        %v1319 = vadd.f32 0.0, %v1318
        %v1320 = vpop.f32.mrf.mxu0
        %v1321 = vadd.f32 0.0, %v1320
        %1322 = vmatmul.bf16.gmra.mxu0 %v1294
        %v1323 = vpop.f32.mrf.mxu0
        %v1324 = vadd.f32 0.0, %v1323
        %v1325 = vpop.f32.mrf.mxu0
        %v1326 = vadd.f32 0.0, %v1325
        %1327 = vdwg.mxu0
        %v1328 = vadd.f32 %v1009, %v1309
        %v1329 = vadd.f32 %v1011, %v1311
        %v1330 = vadd.f32 %v1014, %v1314
        %v1331 = vadd.f32 %v1016, %v1316
        %v1332 = vadd.f32 %v1019, %v1319
        %v1333 = vadd.f32 %v1021, %v1321
        %v1334 = vadd.f32 %v1024, %v1324
        %v1335 = vadd.f32 %v1026, %v1326
        %v1336 = vld [vmem:[#allocation3] sm:$0xff]
        %v1337 = vld [vmem:[#allocation3 + $0x8] sm:$0xff]
        %v1338 = vld [vmem:[#allocation3 + $0x10] sm:$0xff]
        %v1339 = vld [vmem:[#allocation3 + $0x18] sm:$0xff]
        %v1340 = vld [vmem:[#allocation3 + $0x20] sm:$0xff]
        %v1341 = vld [vmem:[#allocation3 + $0x28] sm:$0xff]
        %v1342 = vld [vmem:[#allocation3 + $0x30] sm:$0xff]
        %v1343 = vld [vmem:[#allocation3 + $0x38] sm:$0xff]
        %v1344 = vadd.f32 %v1336, %v1328
        %v1345 = vadd.f32 %v1337, %v1329
        %v1346 = vadd.f32 %v1338, %v1330
        %v1347 = vadd.f32 %v1339, %v1331
        %v1348 = vadd.f32 %v1340, %v1332
        %v1349 = vadd.f32 %v1341, %v1333
        %v1350 = vadd.f32 %v1342, %v1334
        %v1351 = vadd.f32 %v1343, %v1335
        %1352 = vst.msk [vmem:[#allocation3] sm:$0xff] %vm610, %v1344
        %1353 = vst.msk [vmem:[#allocation3 + $0x8] sm:$0xff] %vm610, %v1345
        %1354 = vst.msk [vmem:[#allocation3 + $0x10] sm:$0xff] %vm610, %v1346
        %1355 = vst.msk [vmem:[#allocation3 + $0x18] sm:$0xff] %vm610, %v1347
        %1356 = vst.msk [vmem:[#allocation3 + $0x20] sm:$0xff] %vm610, %v1348
        %1357 = vst.msk [vmem:[#allocation3 + $0x28] sm:$0xff] %vm610, %v1349
        %1358 = vst.msk [vmem:[#allocation3 + $0x30] sm:$0xff] %vm610, %v1350
        %1359 = vst.msk [vmem:[#allocation3 + $0x38] sm:$0xff] %vm610, %v1351
      $region40: #{a_call__.3} parent=31 // pred_fallthru
        _
      %p1360 = scmp.eq.s32.totalorder %s21, 2
      // Predicated region
      $region41: #{a_call__.3} parent=31 // pred_check
        %p1361 = pneg %p1360
      $region42: #{a_call__.3} parent=31 // pred_check_branch
        %1363 = sbr.rel (%p1361) target = $region44
      $region43: #{a_call__.3} parent=31 // pred_region
        %v1364 = vld [vmem:[#allocation3] sm:$0xff]
        %v1365 = vld [vmem:[#allocation3 + $0x8] sm:$0xff]
        %v1366 = vld [vmem:[#allocation3 + $0x10] sm:$0xff]
        %v1367 = vld [vmem:[#allocation3 + $0x18] sm:$0xff]
        %v1368 = vld [vmem:[#allocation3 + $0x20] sm:$0xff]
        %v1369 = vld [vmem:[#allocation3 + $0x28] sm:$0xff]
        %v1370 = vld [vmem:[#allocation3 + $0x30] sm:$0xff]
        %v1371 = vld [vmem:[#allocation3 + $0x38] sm:$0xff]
        %v1372 = vld [vmem:[%s2] sm:$0x1]
        %v1374 = vperm.slane %v1372, 0
        %v1376 = vadd.f32 %v1364, %v1374
        %v1377 = vadd.f32 %v1365, %v1374
        %v1378 = vadd.f32 %v1366, %v1374
        %v1379 = vadd.f32 %v1367, %v1374
        %v1380 = vadd.f32 %v1368, %v1374
        %v1381 = vadd.f32 %v1369, %v1374
        %v1382 = vadd.f32 %v1370, %v1374
        %v1383 = vadd.f32 %v1371, %v1374
        %vm1384 = vcmask 31744
        %1385 = vst.msk [vmem:[%s241] sm:$0xff] %vm1384, %v1376
        %1386 = vst.msk [vmem:[%s241 + $0x8] sm:$0xff] %vm1384, %v1377
        %1387 = vst.msk [vmem:[%s241 + $0x10] sm:$0xff] %vm1384, %v1378
        %1388 = vst.msk [vmem:[%s241 + $0x18] sm:$0xff] %vm1384, %v1379
        %1389 = vst.msk [vmem:[%s241 + $0x20] sm:$0xff] %vm1384, %v1380
        %1390 = vst.msk [vmem:[%s241 + $0x28] sm:$0xff] %vm1384, %v1381
        %1391 = vst.msk [vmem:[%s241 + $0x30] sm:$0xff] %vm1384, %v1382
        %1392 = vst.msk [vmem:[%s241 + $0x38] sm:$0xff] %vm1384, %v1383
      $region44: #{a_call__.3} parent=31 // pred_fallthru
        _
      %p1393 = scmp.lt.s32.totalorder %s19, 1
      %s1394 = scalar_select %p1393, %s19, 1
      %p1395 = scmp.lt.s32.totalorder %s20, 3
      %s1396 = scalar_select %p1395, %s20, 3
      %s1397 = smul.addr %s1396, 8
      %s1398 = smul.addr %s1394, 32
      %s1399 = sadd.s32 %s1397, %s1398
      %s1400 = smul.addr %s1399, 8
      %s1401 = scalar_lea.vmem %s3, %s1400
      // Predicated region
      $region45: #{a_call__.3} parent=31 // pred_check
        %p1402 = pneg %p131
      $region46: #{a_call__.3} parent=31 // pred_check_branch
        %1404 = sbr.rel (%p1402) target = $region48
      $region47: #{a_call__.3} parent=31 // pred_region
        _
      $region48: #{a_call__.3} parent=31 // pred_fallthru
        _
    $region32: #{a_call__.3} parent=5 // pred_fallthru
      _
    %p1405 = scmp.le.s32.totalorder 2, %s9
    // Predicated region
    $region49: #{a_call__.3} parent=5 // pred_check
      %p1406 = pneg %p1405
    $region50: #{a_call__.3} parent=5 // pred_check_branch
      %1408 = sbr.rel (%p1406) target = $region52
    $region51: #{a_call__.3} parent=5 // pred_region
      %s1409 = ssub.s32 %s9, 2
      // Predicated region
      $region53: #{a_call__.3} parent=51 // pred_check
        %p1410 = pneg %p137
      $region54: #{a_call__.3} parent=51 // pred_check_branch
        %1412 = sbr.rel (%p1410) target = $region56
      $region55: #{a_call__.3} parent=51 // pred_region
        %p1413 = scmp.lt.s32.totalorder %s22, 1
        %s1414 = scalar_select %p1413, %s22, 1
        %p1415 = scmp.lt.s32.totalorder %s23, 3
        %s1416 = scalar_select %p1415, %s23, 3
        %s1417 = smul.addr %s1416, 8
        %s1418 = smul.addr %s1414, 32
        %s1419 = sadd.s32 %s1417, %s1418
        %s1420 = smul.addr %s1419, 8
        %s1421 = scalar_lea.vmem %s3, %s1420
      $region56: #{a_call__.3} parent=51 // pred_fallthru
        _
    $region52: #{a_call__.3} parent=5 // pred_fallthru
      _
  $region6: #{a_call__.3} parent=0 // loop_footer
    %s13 = sadd.s32 1, %s9
  $region7: #{a_call__.3} parent=0 // loop_footer_branch
    %8 = sbr.rel target = $region3
  $region8: #{a_call__.3} parent=0 // loop_exit
    _

</llo_original>
